<compile_context>
chip_gen: v5e
topology: v5e:2x2
jax: 0.10.0
libtpu: 0.0.40
codegen_flags: <defaults>
</compile_context>

<pallas_src>
import functools

import jax
import jax.numpy as jnp
from jax.experimental import pallas as pl
from jax.experimental.pallas import tpu as pltpu

LANE = 128            # TPU lane width; kernel-output last dims padded to this.
CONV5_CHUNK = 256     # spatial rows per conv5 GEMM chunk (VMEM cap at 224x224).


# ----------------------------- Pallas kernel --------------------------------

def _fused_kernel(p_ref, bert_ref, maskw_ref, w1_ref, b1_ref, w5_ref, b5_ref,
                  wa_ref, wv_ref, bc_ref, o_ref, *, ho, wo, hp, wp):
    """Whole MultiModalCNN forward for one batch element, VMEM-resident.

    conv1(3x3,s2,p1,BN folded)+ReLU -> MaxPool2d(3,2,1) (shift-based) ->
    conv5(1x1,BN folded)+ReLU with chunked spatial-mean accumulation ->
    [audio stub: normalized-mask @ bert on MXU] -> concat + Linear(1792, C)
    as split-weight matmuls (lane-padded to 128).
    """
    # ---- conv1 as GEMM (BN folded into weight/bias), ReLU ------------------
    patches = p_ref[0]                                            # (ho*wo, 27) bf16
    h = jnp.dot(patches, w1_ref[...], preferred_element_type=jnp.float32)
    h = jnp.maximum(h + b1_ref[...], 0.0)                         # (ho*wo, 128) f32
    c = h.shape[-1]
    # bf16 through the pooling (halves VMEM/vreg footprint; rounding is
    # monotone so max-pooling commutes with the cast).
    h = h.astype(jnp.bfloat16).reshape(ho, wo, c)                 # (ho, wo, 128)

    # ---- MaxPool2d(kernel=3, stride=2, pad=1), separable, shift-based ------
    # H axis: m[i] = max(h[i-1], h[i], h[i+1]) with -inf outside the image.
    ninf_row = jnp.full((1, wo, c), -jnp.inf, jnp.bfloat16)
    up = jnp.concatenate([ninf_row, h[:-1]], axis=0)              # h[i-1]
    dn = jnp.concatenate([h[1:], ninf_row], axis=0)               # h[i+1]
    m = jnp.maximum(jnp.maximum(h, up), dn)                       # (ho, wo, c)
    if 2 * hp - ho:                                               # odd ho: dummy row
        m = jnp.concatenate([m, ninf_row], axis=0)
    m = m.reshape(hp, 2, wo, c)[:, 0]                             # stride-2 centers

    # W axis.
    ninf_col = jnp.full((hp, 1, c), -jnp.inf, jnp.bfloat16)
    lf = jnp.concatenate([ninf_col, m[:, :-1]], axis=1)           # m[:, j-1]
    rt = jnp.concatenate([m[:, 1:], ninf_col], axis=1)            # m[:, j+1]
    mw = jnp.maximum(jnp.maximum(m, lf), rt)                      # (hp, wo, c)
    if 2 * wp - wo:                                               # odd wo: dummy col
        mw = jnp.concatenate([mw, ninf_col], axis=1)
    pooled = mw.reshape(hp, wp, 2, c)[:, :, 0]                    # (hp, wp, c)
    h2 = pooled.reshape(hp * wp, c)                               # (hp*wp, 128) bf16

    # TODO(synk): stage2/3/4 + Modulator + LocalFeatureExtractor skipped
    #             (classes not provided in the source).

    # ---- conv5 (1x1) as chunked GEMM (BN folded), ReLU, spatial mean -------
    # Never materialize the full (hp*wp, 1024) f32 activation; accumulate the
    # spatial sum chunk by chunk.
    m_rows = hp * wp
    acc = None
    for s0 in range(0, m_rows, CONV5_CHUNK):
        e0 = min(s0 + CONV5_CHUNK, m_rows)
        z = jnp.dot(h2[s0:e0], w5_ref[...],
                    preferred_element_type=jnp.float32)
        z = jnp.maximum(z + b5_ref[...], 0.0)                     # (chunk, 1024)
        part = jnp.sum(z, axis=0, keepdims=True)                  # (1, 1024)
        acc = part if acc is None else acc + part
    vis = acc * (1.0 / m_rows)                                    # (1, 1024) f32

    # ---- audio branch stub: normalized-mask @ bert (MXU) -------------------
    # TODO(synk): MMI_Model / FuseModel audio branch unavailable.
    audio = jnp.dot(maskw_ref[0], bert_ref[0],
                    preferred_element_type=jnp.float32)           # (1, 768) f32

    # ---- classifier_1: cat((audio, visual), -1) @ Wc + b (split weights) ---
    ya = jnp.dot(audio.astype(jnp.bfloat16), wa_ref[...],
                 preferred_element_type=jnp.float32)
    yv = jnp.dot(vis.astype(jnp.bfloat16), wv_ref[...],
                 preferred_element_type=jnp.float32)
    o_ref[0] = ya + yv + bc_ref[...]                              # (1, 128)


# ------------------------------ JAX glue -------------------------------------

def _bn_fold(w, gamma, beta, mean, var, eps=1e-5):
    """Fold eval-mode BatchNorm into a (K, Cout) GEMM weight + bias."""
    scale = gamma / jnp.sqrt(var + eps)
    return w * scale[None, :], beta - mean * scale


def _pad_last(a, to):
    return jnp.pad(a, [(0, 0)] * (a.ndim - 1) + [(0, to - a.shape[-1])])


def _im2col_k3_s2_p1(x_nhwc):
    """3x3 / stride-2 / pad-1 patch extraction (JAX glue), emitted in bf16.

    TODO(synk): for real 224x224 inputs move this in-kernel (9 shifted-tap
    GEMMs on the raw NHWC tile) to avoid materializing the 9x patch buffer.
    """
    n, h, w, c = x_nhwc.shape
    ho, wo = (h + 1) // 2, (w + 1) // 2          # correct for odd H/W too
    xp = jnp.pad(x_nhwc, ((0, 0), (1, 1), (1, 1), (0, 0)))
    taps = []
    for kh in range(3):
        for kw in range(3):
            taps.append(xp[:, kh::2, kw::2, :][:, :ho, :wo, :])
    patches = jnp.stack(taps, axis=3)            # (N, Ho, Wo, 9, Cin)
    patches = patches.reshape(n, ho * wo, 9 * c).astype(jnp.bfloat16)
    return patches, (ho, wo)


def init_params(key, num_classes=8):
    c1_in, c1_out = 3, 29
    c5_in, c5_out = 29, 1024   # TODO(synk): original conv5 in_channels is 464 (stages skipped).
    d_audio, d_vis = 768, 1024
    k0, k1, k2 = jax.random.split(key, 3)
    f32 = jnp.float32
    return {
        # conv1: Conv2d(3, 29, 3, 2, 1, bias=False); rows ordered (kh, kw, cin)
        # (a real port would permute the PyTorch (cout,cin,kh,kw) weight).
        "w1": 0.1 * jax.random.normal(k0, (3 * 3 * c1_in, c1_out), f32),
        "bn1_gamma": jnp.ones((c1_out,), f32), "bn1_beta": jnp.zeros((c1_out,), f32),
        "bn1_mean": jnp.zeros((c1_out,), f32), "bn1_var": jnp.ones((c1_out,), f32),
        # conv5: 1x1 conv (cin, cout)
        "w5": 0.1 * jax.random.normal(k1, (c5_in, c5_out), f32),
        "bn5_gamma": jnp.ones((c5_out,), f32), "bn5_beta": jnp.zeros((c5_out,), f32),
        "bn5_mean": jnp.zeros((c5_out,), f32), "bn5_var": jnp.ones((c5_out,), f32),
        # classifier_1: Linear(1792, num_classes) — rows 0:768 audio, 768: visual.
        "wc": 0.05 * jax.random.normal(k2, (d_audio + d_vis, num_classes), f32),
        "bc": jnp.zeros((num_classes,), f32),
    }


def multimodal_cnn_forward(params, x_audio, x_visual_nchw, bert_output,
                           attention_mask, acoustic_input, acoustic_length,
                           ctc_labels, emotion_labels, *, num_classes=8):
    # x_audio and the acoustic/ctc/emotion inputs feed MMI_Model (unavailable);
    # x_audio is also immediately overwritten in the PyTorch forward.
    del x_audio, acoustic_input, acoustic_length, ctc_labels, emotion_labels
    assert num_classes <= LANE

    # ---- visual branch: im2col for conv1 (glue, bf16), rest in-kernel ------
    x = jnp.transpose(x_visual_nchw, (0, 2, 3, 1)).astype(jnp.float32)  # NHWC
    patches, (ho, wo) = _im2col_k3_s2_p1(x)              # (N, Ho*Wo, 27) bf16
    n = patches.shape[0]
    hp, wp = (ho + 1) // 2, (wo + 1) // 2                # after MaxPool2d(3,2,1)

    # ---- fold BN into weights, lane-pad to 128, bf16 GEMM operands ---------
    w1, b1 = _bn_fold(params["w1"], params["bn1_gamma"], params["bn1_beta"],
                      params["bn1_mean"], params["bn1_var"])
    w5, b5 = _bn_fold(params["w5"], params["bn5_gamma"], params["bn5_beta"],
                      params["bn5_mean"], params["bn5_var"])
    c1 = w1.shape[1]                                     # 29 real channels
    w1p = _pad_last(w1, LANE).astype(jnp.bfloat16)       # (27, 128) zero-pad cols
    b1p = _pad_last(b1, LANE).reshape(1, LANE)           # (1, 128), pad -> 0
    w5p = jnp.pad(w5, ((0, LANE - c1), (0, 0))).astype(jnp.bfloat16)  # (128, 1024)
    b5p = b5.reshape(1, -1)                              # (1, 1024)

    d_audio = bert_output.shape[-1]
    wa = _pad_last(params["wc"][:d_audio], LANE).astype(jnp.bfloat16)   # (768, 128)
    wv = _pad_last(params["wc"][d_audio:], LANE).astype(jnp.bfloat16)   # (1024, 128)
    bc = _pad_last(params["bc"], LANE).reshape(1, LANE)                 # (1, 128)

    bert = bert_output.astype(jnp.bfloat16)              # (N, S, 768)
    s = bert.shape[1]
    # Normalized mask row: audio mean = maskw @ bert (MXU), denom pre-folded.
    mask = attention_mask.astype(jnp.float32)            # (N, S)
    denom = jnp.maximum(jnp.sum(mask, axis=1, keepdims=True), 1.0)
    maskw = (mask / denom).astype(jnp.bfloat16).reshape(n, 1, s)

    k1dim = patches.shape[-1]
    c5 = w5p.shape[1]

    # Advisory cost estimate so XLA overlaps wrapper-side im2col with the kernel.
    flops = 2 * n * (ho * wo * k1dim * LANE + hp * wp * LANE * c5
                     + s * d_audio + d_audio * LANE + c5 * LANE)
    bytes_accessed = int(
        patches.size * 2 + bert.size * 2 + maskw.size * 2
        + (w1p.size + w5p.size + wa.size + wv.size) * 2
        + (b1p.size + b5p.size + bc.size) * 4
        + n * LANE * 4)
    cost = pl.CostEstimate(flops=int(flops), transcendentals=0,
                           bytes_accessed=bytes_accessed)

    kern = functools.partial(_fused_kernel, ho=ho, wo=wo, hp=hp, wp=wp)
    logits_pad = pl.pallas_call(
        kern,
        out_shape=jax.ShapeDtypeStruct((n, 1, LANE), jnp.float32),
        grid=(n,),
        in_specs=[
            pl.BlockSpec((1, ho * wo, k1dim), lambda i: (i, 0, 0)),  # patches bf16
            pl.BlockSpec((1, s, d_audio), lambda i: (i, 0, 0)),      # bert bf16
            pl.BlockSpec((1, 1, s), lambda i: (i, 0, 0)),            # mask/denom row
            pl.BlockSpec((k1dim, LANE), lambda i: (0, 0)),           # w1 (folded)
            pl.BlockSpec((1, LANE), lambda i: (0, 0)),               # b1
            pl.BlockSpec((LANE, c5), lambda i: (0, 0)),              # w5 (folded)
            pl.BlockSpec((1, c5), lambda i: (0, 0)),                 # b5
            pl.BlockSpec((d_audio, LANE), lambda i: (0, 0)),         # wc audio
            pl.BlockSpec((c5, LANE), lambda i: (0, 0)),              # wc visual
            pl.BlockSpec((1, LANE), lambda i: (0, 0)),               # bias
        ],
        out_specs=pl.BlockSpec((1, 1, LANE), lambda i: (i, 0, 0)),
        compiler_params=pltpu.CompilerParams(
            dimension_semantics=("parallel",),
            vmem_limit_bytes=32 * 1024 * 1024),
        cost_estimate=cost,
    )(patches, bert, maskw, w1p, b1p, w5p, b5p, wa, wv, bc)

    return logits_pad.reshape(n, LANE)[:, :num_classes]


if __name__ == "__main__":
    key = jax.random.PRNGKey(0)
    kp, kv, kb, ka = jax.random.split(key, 4)

    num_classes = 8
    params = init_params(kp, num_classes)

    B, S = 2, 8
    x_visual = jax.random.normal(kv, (B, 3, 16, 16), jnp.float32)   # NCHW
    bert_output = jax.random.normal(kb, (B, S, 768), jnp.float32)
    x_audio = jax.random.normal(ka, (B, S, 40), jnp.float32)        # unused
    attention_mask = jnp.ones((B, S), jnp.float32)
    acoustic_input = jnp.zeros((B, S, 40), jnp.float32)
    acoustic_length = jnp.full((B,), S, jnp.int32)
    ctc_labels = jnp.zeros((B, S), jnp.int32)
    emotion_labels = jnp.zeros((B,), jnp.int32)

    out = multimodal_cnn_forward(params, x_audio, x_visual, bert_output,
                                 attention_mask, acoustic_input, acoustic_length,
                                 ctc_labels, emotion_labels,
                                 num_classes=num_classes)
    out = jax.block_until_ready(out)
    assert out.shape == (B, num_classes), out.shape
    assert bool(jnp.all(jnp.isfinite(out)))
    print("KERNEL_OK")
</pallas_src>

<mosaic_0001>
module attributes {stable_mosaic.version = 11 : i64} {
  func.func @_fused_kernel(%arg0: i32, %arg1: memref<1x64x27xbf16, #tpu.memory_space<vmem>>, %arg2: memref<1x8x768xbf16, #tpu.memory_space<vmem>>, %arg3: memref<1x1x8xbf16, #tpu.memory_space<vmem>>, %arg4: memref<27x128xbf16, #tpu.memory_space<vmem>>, %arg5: memref<1x128xf32, #tpu.memory_space<vmem>>, %arg6: memref<128x1024xbf16, #tpu.memory_space<vmem>>, %arg7: memref<1x1024xf32, #tpu.memory_space<vmem>>, %arg8: memref<768x128xbf16, #tpu.memory_space<vmem>>, %arg9: memref<1024x128xbf16, #tpu.memory_space<vmem>>, %arg10: memref<1x128xf32, #tpu.memory_space<vmem>>, %arg11: memref<1x1x128xf32, #tpu.memory_space<vmem>>) attributes {dimension_semantics = [#tpu.dimension_semantics<parallel>], iteration_bounds = array<i64: 2>, scalar_prefetch = 0 : i64, scratch_operands = 0 : i64, tpu.core_type = #tpu.core_type<tc>, window_params = [{transform_indices = @transform_0, window_bounds = array<i64: 1, 64, 27>}, {transform_indices = @transform_1, window_bounds = array<i64: 1, 8, 768>}, {transform_indices = @transform_2, window_bounds = array<i64: 1, 1, 8>}, {pipeline_mode = #tpu.pipeline_mode<synchronous>, transform_indices = @transform_3, window_bounds = array<i64: 27, 128>}, {pipeline_mode = #tpu.pipeline_mode<synchronous>, transform_indices = @transform_4, window_bounds = array<i64: 1, 128>}, {pipeline_mode = #tpu.pipeline_mode<synchronous>, transform_indices = @transform_5, window_bounds = array<i64: 128, 1024>}, {pipeline_mode = #tpu.pipeline_mode<synchronous>, transform_indices = @transform_6, window_bounds = array<i64: 1, 1024>}, {pipeline_mode = #tpu.pipeline_mode<synchronous>, transform_indices = @transform_7, window_bounds = array<i64: 768, 128>}, {pipeline_mode = #tpu.pipeline_mode<synchronous>, transform_indices = @transform_8, window_bounds = array<i64: 1024, 128>}, {pipeline_mode = #tpu.pipeline_mode<synchronous>, transform_indices = @transform_9, window_bounds = array<i64: 1, 128>}, {transform_indices = @transform_10, window_bounds = array<i64: 1, 1, 128>}]} {
    %c0 = arith.constant 0 : index
    %c0_0 = arith.constant 0 : index
    %c0_1 = arith.constant 0 : index
    %0 = vector.load %arg1[%c0, %c0_0, %c0_1] : memref<1x64x27xbf16, #tpu.memory_space<vmem>>, vector<1x64x27xbf16>
    %1 = vector.shape_cast %0 : vector<1x64x27xbf16> to vector<64x27xbf16>
    %c0_2 = arith.constant 0 : index
    %c0_3 = arith.constant 0 : index
    %2 = vector.load %arg4[%c0_2, %c0_3] : memref<27x128xbf16, #tpu.memory_space<vmem>>, vector<27x128xbf16>
    %cst = arith.constant dense<0.000000e+00> : vector<64x128xf32>
    %3 = tpu.matmul %1, %2, %cst {dimension_numbers = #tpu.dot_dimension_numbers<[1], [0], [0], [1], [0, 0, 1, 1], [], []>} : vector<64x27xbf16>, vector<27x128xbf16>, vector<64x128xf32> -> vector<64x128xf32>
    %c0_4 = arith.constant 0 : index
    %c0_5 = arith.constant 0 : index
    %4 = vector.load %arg5[%c0_4, %c0_5] : memref<1x128xf32, #tpu.memory_space<vmem>>, vector<1x128xf32>
    %5 = vector.broadcast %4 : vector<1x128xf32> to vector<64x128xf32>
    %6 = arith.addf %3, %5 : vector<64x128xf32>
    %cst_6 = arith.constant 0.000000e+00 : f32
    %7 = vector.broadcast %cst_6 : f32 to vector<64x128xf32>
    %8 = arith.maximumf %6, %7 : vector<64x128xf32>
    %9 = arith.truncf %8 : vector<64x128xf32> to vector<64x128xbf16>
    %10 = vector.shape_cast %9 : vector<64x128xbf16> to vector<8x8x128xbf16>
    %cst_7 = arith.constant 0xFF80 : bf16
    %11 = vector.broadcast %cst_7 : bf16 to vector<1x8x128xbf16>
    %12 = vector.extract_strided_slice %10 {offsets = [0, 0, 0], sizes = [7, 8, 128], strides = [1, 1, 1]} : vector<8x8x128xbf16> to vector<7x8x128xbf16>
    %13 = tpu.concatenate %11, %12 in 0 : vector<1x8x128xbf16>, vector<7x8x128xbf16> -> vector<8x8x128xbf16>
    %14 = vector.extract_strided_slice %10 {offsets = [1, 0, 0], sizes = [7, 8, 128], strides = [1, 1, 1]} : vector<8x8x128xbf16> to vector<7x8x128xbf16>
    %15 = tpu.concatenate %14, %11 in 0 : vector<7x8x128xbf16>, vector<1x8x128xbf16> -> vector<8x8x128xbf16>
    %16 = arith.maximumf %10, %13 : vector<8x8x128xbf16>
    %17 = arith.maximumf %16, %15 : vector<8x8x128xbf16>
    %18 = vector.shape_cast %17 : vector<8x8x128xbf16> to vector<4x2x8x128xbf16>
    %19 = vector.extract_strided_slice %18 {offsets = [0, 0, 0, 0], sizes = [4, 1, 8, 128], strides = [1, 1, 1, 1]} : vector<4x2x8x128xbf16> to vector<4x1x8x128xbf16>
    %20 = vector.shape_cast %19 : vector<4x1x8x128xbf16> to vector<4x8x128xbf16>
    %cst_8 = arith.constant 0xFF80 : bf16
    %21 = vector.broadcast %cst_8 : bf16 to vector<4x1x128xbf16>
    %22 = vector.extract_strided_slice %20 {offsets = [0, 0, 0], sizes = [4, 7, 128], strides = [1, 1, 1]} : vector<4x8x128xbf16> to vector<4x7x128xbf16>
    %23 = tpu.concatenate %21, %22 in 1 : vector<4x1x128xbf16>, vector<4x7x128xbf16> -> vector<4x8x128xbf16>
    %24 = vector.extract_strided_slice %20 {offsets = [0, 1, 0], sizes = [4, 7, 128], strides = [1, 1, 1]} : vector<4x8x128xbf16> to vector<4x7x128xbf16>
    %25 = tpu.concatenate %24, %21 in 1 : vector<4x7x128xbf16>, vector<4x1x128xbf16> -> vector<4x8x128xbf16>
    %26 = arith.maximumf %20, %23 : vector<4x8x128xbf16>
    %27 = arith.maximumf %26, %25 : vector<4x8x128xbf16>
    %28 = vector.shape_cast %27 : vector<4x8x128xbf16> to vector<4x4x2x128xbf16>
    %29 = vector.extract_strided_slice %28 {offsets = [0, 0, 0, 0], sizes = [4, 4, 1, 128], strides = [1, 1, 1, 1]} : vector<4x4x2x128xbf16> to vector<4x4x1x128xbf16>
    %30 = vector.shape_cast %29 : vector<4x4x1x128xbf16> to vector<4x4x128xbf16>
    %31 = vector.shape_cast %30 : vector<4x4x128xbf16> to vector<16x128xbf16>
    %c0_9 = arith.constant 0 : index
    %c0_10 = arith.constant 0 : index
    %32 = vector.load %arg6[%c0_9, %c0_10] : memref<128x1024xbf16, #tpu.memory_space<vmem>>, vector<128x1024xbf16>
    %cst_11 = arith.constant dense<0.000000e+00> : vector<16x1024xf32>
    %33 = tpu.matmul %31, %32, %cst_11 {dimension_numbers = #tpu.dot_dimension_numbers<[1], [0], [0], [1], [0, 0, 1, 1], [], []>} : vector<16x128xbf16>, vector<128x1024xbf16>, vector<16x1024xf32> -> vector<16x1024xf32>
    %c0_12 = arith.constant 0 : index
    %c0_13 = arith.constant 0 : index
    %34 = vector.load %arg7[%c0_12, %c0_13] : memref<1x1024xf32, #tpu.memory_space<vmem>>, vector<1x1024xf32>
    %35 = vector.broadcast %34 : vector<1x1024xf32> to vector<16x1024xf32>
    %36 = arith.addf %33, %35 : vector<16x1024xf32>
    %cst_14 = arith.constant 0.000000e+00 : f32
    %37 = vector.broadcast %cst_14 : f32 to vector<16x1024xf32>
    %38 = arith.maximumf %36, %37 : vector<16x1024xf32>
    %cst_15 = arith.constant dense<0.000000e+00> : vector<1024xf32>
    %39 = vector.multi_reduction <add>, %38, %cst_15 [0] : vector<16x1024xf32> to vector<1024xf32>
    %40 = vector.shape_cast %39 : vector<1024xf32> to vector<1x1024xf32>
    %cst_16 = arith.constant 6.250000e-02 : f32
    %41 = vector.broadcast %cst_16 : f32 to vector<1x1024xf32>
    %42 = arith.mulf %40, %41 : vector<1x1024xf32>
    %c0_17 = arith.constant 0 : index
    %c0_18 = arith.constant 0 : index
    %c0_19 = arith.constant 0 : index
    %43 = vector.load %arg3[%c0_17, %c0_18, %c0_19] : memref<1x1x8xbf16, #tpu.memory_space<vmem>>, vector<1x1x8xbf16>
    %44 = vector.shape_cast %43 : vector<1x1x8xbf16> to vector<1x8xbf16>
    %c0_20 = arith.constant 0 : index
    %c0_21 = arith.constant 0 : index
    %c0_22 = arith.constant 0 : index
    %45 = vector.load %arg2[%c0_20, %c0_21, %c0_22] : memref<1x8x768xbf16, #tpu.memory_space<vmem>>, vector<1x8x768xbf16>
    %46 = vector.shape_cast %45 : vector<1x8x768xbf16> to vector<8x768xbf16>
    %cst_23 = arith.constant dense<0.000000e+00> : vector<1x768xf32>
    %47 = tpu.matmul %44, %46, %cst_23 {dimension_numbers = #tpu.dot_dimension_numbers<[1], [0], [0], [1], [0, 0, 1, 1], [], []>} : vector<1x8xbf16>, vector<8x768xbf16>, vector<1x768xf32> -> vector<1x768xf32>
    %48 = arith.truncf %47 : vector<1x768xf32> to vector<1x768xbf16>
    %c0_24 = arith.constant 0 : index
    %c0_25 = arith.constant 0 : index
    %49 = vector.load %arg8[%c0_24, %c0_25] : memref<768x128xbf16, #tpu.memory_space<vmem>>, vector<768x128xbf16>
    %cst_26 = arith.constant dense<0.000000e+00> : vector<1x128xf32>
    %50 = tpu.matmul %48, %49, %cst_26 {dimension_numbers = #tpu.dot_dimension_numbers<[1], [0], [0], [1], [0, 0, 1, 1], [], []>} : vector<1x768xbf16>, vector<768x128xbf16>, vector<1x128xf32> -> vector<1x128xf32>
    %51 = arith.truncf %42 : vector<1x1024xf32> to vector<1x1024xbf16>
    %c0_27 = arith.constant 0 : index
    %c0_28 = arith.constant 0 : index
    %52 = vector.load %arg9[%c0_27, %c0_28] : memref<1024x128xbf16, #tpu.memory_space<vmem>>, vector<1024x128xbf16>
    %cst_29 = arith.constant dense<0.000000e+00> : vector<1x128xf32>
    %53 = tpu.matmul %51, %52, %cst_29 {dimension_numbers = #tpu.dot_dimension_numbers<[1], [0], [0], [1], [0, 0, 1, 1], [], []>} : vector<1x1024xbf16>, vector<1024x128xbf16>, vector<1x128xf32> -> vector<1x128xf32>
    %54 = arith.addf %50, %53 : vector<1x128xf32>
    %c0_30 = arith.constant 0 : index
    %c0_31 = arith.constant 0 : index
    %55 = vector.load %arg10[%c0_30, %c0_31] : memref<1x128xf32, #tpu.memory_space<vmem>>, vector<1x128xf32>
    %56 = arith.addf %54, %55 : vector<1x128xf32>
    %c0_32 = arith.constant 0 : index
    %c0_33 = arith.constant 0 : index
    %c0_34 = arith.constant 0 : index
    %57 = vector.load %arg11[%c0_32, %c0_33, %c0_34] : memref<1x1x128xf32, #tpu.memory_space<vmem>>, vector<1x1x128xf32>
    %58 = vector.shape_cast %57 : vector<1x1x128xf32> to vector<1x128xf32>
    %59 = vector.shape_cast %56 : vector<1x128xf32> to vector<1x1x128xf32>
    tpu.vector_store %arg11[%c0_32, %c0_33, %c0_34], %59 {strides = array<i32>} : memref<1x1x128xf32, #tpu.memory_space<vmem>>, vector<1x1x128xf32>,
    return
  }
  func.func @transform_0(%arg0: i32) -> (i32, i32, i32) {
    %c0_i32 = arith.constant 0 : i32
    %c0_i32_0 = arith.constant 0 : i32
    %c0_i32_1 = arith.constant 0 : i32
    return %arg0, %c0_i32, %c0_i32_0 : i32, i32, i32
  }
  func.func @transform_1(%arg0: i32) -> (i32, i32, i32) {
    %c0_i32 = arith.constant 0 : i32
    %c0_i32_0 = arith.constant 0 : i32
    %c0_i32_1 = arith.constant 0 : i32
    return %arg0, %c0_i32, %c0_i32_0 : i32, i32, i32
  }
  func.func @transform_2(%arg0: i32) -> (i32, i32, i32) {
    %c0_i32 = arith.constant 0 : i32
    %c0_i32_0 = arith.constant 0 : i32
    %c0_i32_1 = arith.constant 0 : i32
    return %arg0, %c0_i32, %c0_i32_0 : i32, i32, i32
  }
  func.func @transform_3(%arg0: i32) -> (i32, i32) {
    %c0_i32 = arith.constant 0 : i32
    %c0_i32_0 = arith.constant 0 : i32
    %c0_i32_1 = arith.constant 0 : i32
    return %c0_i32, %c0_i32_0 : i32, i32
  }
  func.func @transform_4(%arg0: i32) -> (i32, i32) {
    %c0_i32 = arith.constant 0 : i32
    %c0_i32_0 = arith.constant 0 : i32
    %c0_i32_1 = arith.constant 0 : i32
    return %c0_i32, %c0_i32_0 : i32, i32
  }
  func.func @transform_5(%arg0: i32) -> (i32, i32) {
    %c0_i32 = arith.constant 0 : i32
    %c0_i32_0 = arith.constant 0 : i32
    %c0_i32_1 = arith.constant 0 : i32
    return %c0_i32, %c0_i32_0 : i32, i32
  }
  func.func @transform_6(%arg0: i32) -> (i32, i32) {
    %c0_i32 = arith.constant 0 : i32
    %c0_i32_0 = arith.constant 0 : i32
    %c0_i32_1 = arith.constant 0 : i32
    return %c0_i32, %c0_i32_0 : i32, i32
  }
  func.func @transform_7(%arg0: i32) -> (i32, i32) {
    %c0_i32 = arith.constant 0 : i32
    %c0_i32_0 = arith.constant 0 : i32
    %c0_i32_1 = arith.constant 0 : i32
    return %c0_i32, %c0_i32_0 : i32, i32
  }
  func.func @transform_8(%arg0: i32) -> (i32, i32) {
    %c0_i32 = arith.constant 0 : i32
    %c0_i32_0 = arith.constant 0 : i32
    %c0_i32_1 = arith.constant 0 : i32
    return %c0_i32, %c0_i32_0 : i32, i32
  }
  func.func @transform_9(%arg0: i32) -> (i32, i32) {
    %c0_i32 = arith.constant 0 : i32
    %c0_i32_0 = arith.constant 0 : i32
    %c0_i32_1 = arith.constant 0 : i32
    return %c0_i32, %c0_i32_0 : i32, i32
  }
  func.func @transform_10(%arg0: i32) -> (i32, i32, i32) {
    %c0_i32 = arith.constant 0 : i32
    %c0_i32_0 = arith.constant 0 : i32
    %c0_i32_1 = arith.constant 0 : i32
    return %arg0, %c0_i32, %c0_i32_0 : i32, i32, i32
  }
}

</mosaic_0001>

<llo_original>
// kernel: tpu_custom_call.1
$region0: #{tpu_custom_call.1}
  #allocation0 [shape = 'u32[]', space=smem, size = 0x4, offset = 0x4, fixed_abs, tag = 'smem constant byte address 0x4 - core index']
  #allocation1 [shape = 'u32[72,128]{1,0:T(1,128)}', space=vmem, size = 0x9000, scoped, tag = 'internal scratch']
  %s0 = inlined_call_operand.vmem [shape: bf16[2,64,27], index: 0, kind: input, shape index: {}]
  %s1 = inlined_call_operand.vmem [shape: bf16[2,8,768], index: 1, kind: input, shape index: {}]
  %s2 = inlined_call_operand.vmem [shape: bf16[2,1,8], index: 2, kind: input, shape index: {}]
  %s3 = inlined_call_operand.vmem [shape: bf16[27,128], index: 3, kind: input, shape index: {}]
  %s4 = inlined_call_operand.vmem [shape: f32[1,128], index: 4, kind: input, shape index: {}]
  %s5 = inlined_call_operand.hbm [shape: bf16[128,1024], index: 5, kind: input, shape index: {}]
  %s6 = inlined_call_operand.vmem [shape: f32[1,1024], index: 6, kind: input, shape index: {}]
  %s7 = inlined_call_operand.hbm [shape: bf16[768,128], index: 7, kind: input, shape index: {}]
  %s8 = inlined_call_operand.hbm [shape: bf16[1024,128], index: 8, kind: input, shape index: {}]
  %s9 = inlined_call_operand.vmem [shape: f32[1,128], index: 9, kind: input, shape index: {}]
  %s10 = inlined_call_operand.hbm [shape: f32[2,1,128], index: 10, kind: output, shape index: {}]
  %s11 = sld [smem:[#allocation0]]
  $region85: #{tpu_custom_call.1} parent=0
    _
  %s13 = ssub.s32 1, %s11
  %s14 = scalar_select 0, %s13, %s11
  $region1: #{tpu_custom_call.1} parent=0
    #allocation2 [shape = 'u8[262144]{0}', space=vmem, size = 0x40000, scoped, tag = 'input window, operand 5, single buffered']
    #allocation3 [shape = 's32[2]{0}', space=sflag, size = 0x8, scoped, tag = 'scoped memory for tpu_custom_call.1']
    #allocation4 [shape = 's32[2]{0}', space=sflag, size = 0x8, scoped, tag = 'scoped memory for tpu_custom_call.1']
    #allocation5 [shape = 'u8[196608]{0}', space=vmem, size = 0x30000, scoped, tag = 'input window, operand 7, single buffered']
    #allocation6 [shape = 's32[1]{0}', space=sflag, size = 0x4, scoped, tag = 'scoped memory for tpu_custom_call.1']
    #allocation7 [shape = 'u8[262144]{0}', space=vmem, size = 0x40000, scoped, tag = 'input window, operand 8, single buffered']
    #allocation8 [shape = 'u8[1024]{0}', space=vmem, size = 0x400, scoped, tag = 'output window, operand 0']
    %15 = vsyncpa [#allocation3], 0
    %16 = vsyncpa [#allocation6], 0
    %17 = vsyncpa [#allocation4], 0
    %s18 = scalar_lea.sflag [#allocation4], 1
    %19 = vsyncpa %s18, 0
    loop: start=0, step=1, limit=4
    $region2: #{tpu_custom_call.1} parent=1 // loop_pre_header
      _
    $region3: #{tpu_custom_call.1} parent=1 // loop_header
      %s21 = sphi 0, %s25
      %p22 = scmp.ge.s32.totalorder %s21, 4
      %s31 = sphi 0, %s33
      %s34 = sphi 0, %s31
      %s35 = sphi 0, %s34
      %s51 = sphi 0, %s35
      %s57 = sphi 0, %s59
      %s60 = sphi 0, %s57
      %s61 = sphi 0, %s60
      %s77 = sphi 0, %s61
      %s83 = sphi 0, %s85
      %s86 = sphi 0, %s83
      %s87 = sphi 0, %s86
      %s103 = sphi 0, %s87
      %s107 = sphi 0, %s107
      %s109 = sphi 0, %s107
      %s110 = sphi 0, %s109
      %s124 = sphi 0, %s110
      %s128 = sphi 0, %s128
      %s130 = sphi 0, %s128
      %s131 = sphi 0, %s130
      %s145 = sphi 0, %s131
      %s149 = sphi 0, %s149
      %s151 = sphi 0, %s149
      %s152 = sphi 0, %s151
      %s166 = sphi 0, %s152
      %s170 = sphi 0, %s170
      %s172 = sphi 0, %s170
      %s173 = sphi 0, %s172
      %s187 = sphi 0, %s173
      %s191 = sphi 0, %s191
      %s193 = sphi 0, %s191
      %s194 = sphi 0, %s193
      %s208 = sphi 0, %s194
      %s212 = sphi 0, %s212
      %s214 = sphi 0, %s212
      %s215 = sphi 0, %s214
      %s229 = sphi 0, %s215
      %s233 = sphi 0, %s233
      %s235 = sphi 0, %s233
      %s236 = sphi 0, %s235
      %s250 = sphi 0, %s236
      %s256 = sphi 0, %s258
      %s259 = sphi 0, %s256
      %s260 = sphi 0, %s259
      %s276 = sphi 0, %s260
    $region4: #{tpu_custom_call.1} parent=1 // loop_header_branch
      %24 = sbr.rel (%p22) target = $region8
    $region5: #{tpu_custom_call.1} parent=1 // loop_body
      %s26 = ssub.s32 %s21, 1
      %s27 = ssub.s32 %s21, 2
      %s28 = sadd.s32 %s21, 1
      %s29 = ssub.s32 %s21, %s28
      %p30 = scmp.eq.s32.totalorder %s29, 0
      %s32 = sadd.s32 %s31, 1
      %s33 = scalar_select %p30, %s31, %s32
      %p36 = pneg %p30
      %p37 = scmp.eq.s32.totalorder %s21, 1
      %p38 = por %p36, %p37
      %p39 = scmp.ne.s32.totalorder %s31, %s34
      %p40 = scmp.eq.s32.totalorder %s21, 0
      %p41 = por %p39, %p40
      %p42 = scmp.ne.s32.totalorder %s31, %s34
      %p43 = scmp.eq.s32.totalorder %s26, 1
      %p44 = por %p42, %p43
      %p45 = scmp.ne.s32.totalorder %s34, %s35
      %p46 = scmp.eq.s32.totalorder %s26, 0
      %p47 = por %p45, %p46
      %p48 = scmp.ne.s32.totalorder %s34, %s35
      %p49 = scmp.eq.s32.totalorder %s27, 1
      %p50 = por %p48, %p49
      %p52 = scmp.ne.s32.totalorder %s35, %s51
      %p53 = scmp.eq.s32.totalorder %s27, 0
      %p54 = por %p52, %p53
      %s55 = ssub.s32 %s21, %s28
      %p56 = scmp.eq.s32.totalorder %s55, 0
      %s58 = sadd.s32 %s57, 1
      %s59 = scalar_select %p56, %s57, %s58
      %p62 = pneg %p56
      %p63 = scmp.eq.s32.totalorder %s21, 1
      %p64 = por %p62, %p63
      %p65 = scmp.ne.s32.totalorder %s57, %s60
      %p66 = scmp.eq.s32.totalorder %s21, 0
      %p67 = por %p65, %p66
      %p68 = scmp.ne.s32.totalorder %s57, %s60
      %p69 = scmp.eq.s32.totalorder %s26, 1
      %p70 = por %p68, %p69
      %p71 = scmp.ne.s32.totalorder %s60, %s61
      %p72 = scmp.eq.s32.totalorder %s26, 0
      %p73 = por %p71, %p72
      %p74 = scmp.ne.s32.totalorder %s60, %s61
      %p75 = scmp.eq.s32.totalorder %s27, 1
      %p76 = por %p74, %p75
      %p78 = scmp.ne.s32.totalorder %s61, %s77
      %p79 = scmp.eq.s32.totalorder %s27, 0
      %p80 = por %p78, %p79
      %s81 = ssub.s32 %s21, %s28
      %p82 = scmp.eq.s32.totalorder %s81, 0
      %s84 = sadd.s32 %s83, 1
      %s85 = scalar_select %p82, %s83, %s84
      %p88 = pneg %p82
      %p89 = scmp.eq.s32.totalorder %s21, 1
      %p90 = por %p88, %p89
      %p91 = scmp.ne.s32.totalorder %s83, %s86
      %p92 = scmp.eq.s32.totalorder %s21, 0
      %p93 = por %p91, %p92
      %p94 = scmp.ne.s32.totalorder %s83, %s86
      %p95 = scmp.eq.s32.totalorder %s26, 1
      %p96 = por %p94, %p95
      %p97 = scmp.ne.s32.totalorder %s86, %s87
      %p98 = scmp.eq.s32.totalorder %s26, 0
      %p99 = por %p97, %p98
      %p100 = scmp.ne.s32.totalorder %s86, %s87
      %p101 = scmp.eq.s32.totalorder %s27, 1
      %p102 = por %p100, %p101
      %p104 = scmp.ne.s32.totalorder %s87, %s103
      %p105 = scmp.eq.s32.totalorder %s27, 0
      %p106 = por %p104, %p105
      %s108 = sadd.s32 %s107, 1
      %p111 = scmp.eq.s32.totalorder %s21, 1
      %p112 = scmp.ne.s32.totalorder %s107, %s109
      %p113 = scmp.eq.s32.totalorder %s21, 0
      %p114 = por %p112, %p113
      %p115 = scmp.ne.s32.totalorder %s107, %s109
      %p116 = scmp.eq.s32.totalorder %s26, 1
      %p117 = por %p115, %p116
      %p118 = scmp.ne.s32.totalorder %s109, %s110
      %p119 = scmp.eq.s32.totalorder %s26, 0
      %p120 = por %p118, %p119
      %p121 = scmp.ne.s32.totalorder %s109, %s110
      %p122 = scmp.eq.s32.totalorder %s27, 1
      %p123 = por %p121, %p122
      %p125 = scmp.ne.s32.totalorder %s110, %s124
      %p126 = scmp.eq.s32.totalorder %s27, 0
      %p127 = por %p125, %p126
      %s129 = sadd.s32 %s128, 1
      %p132 = scmp.eq.s32.totalorder %s21, 1
      %p133 = scmp.ne.s32.totalorder %s128, %s130
      %p134 = scmp.eq.s32.totalorder %s21, 0
      %p135 = por %p133, %p134
      %p136 = scmp.ne.s32.totalorder %s128, %s130
      %p137 = scmp.eq.s32.totalorder %s26, 1
      %p138 = por %p136, %p137
      %p139 = scmp.ne.s32.totalorder %s130, %s131
      %p140 = scmp.eq.s32.totalorder %s26, 0
      %p141 = por %p139, %p140
      %p142 = scmp.ne.s32.totalorder %s130, %s131
      %p143 = scmp.eq.s32.totalorder %s27, 1
      %p144 = por %p142, %p143
      %p146 = scmp.ne.s32.totalorder %s131, %s145
      %p147 = scmp.eq.s32.totalorder %s27, 0
      %p148 = por %p146, %p147
      %s150 = sadd.s32 %s149, 1
      %p153 = scmp.eq.s32.totalorder %s21, 1
      %p154 = scmp.ne.s32.totalorder %s149, %s151
      %p155 = scmp.eq.s32.totalorder %s21, 0
      %p156 = por %p154, %p155
      %p157 = scmp.ne.s32.totalorder %s149, %s151
      %p158 = scmp.eq.s32.totalorder %s26, 1
      %p159 = por %p157, %p158
      %p160 = scmp.ne.s32.totalorder %s151, %s152
      %p161 = scmp.eq.s32.totalorder %s26, 0
      %p162 = por %p160, %p161
      %p163 = scmp.ne.s32.totalorder %s151, %s152
      %p164 = scmp.eq.s32.totalorder %s27, 1
      %p165 = por %p163, %p164
      %p167 = scmp.ne.s32.totalorder %s152, %s166
      %p168 = scmp.eq.s32.totalorder %s27, 0
      %p169 = por %p167, %p168
      %s171 = sadd.s32 %s170, 1
      %p174 = scmp.eq.s32.totalorder %s21, 1
      %p175 = scmp.ne.s32.totalorder %s170, %s172
      %p176 = scmp.eq.s32.totalorder %s21, 0
      %p177 = por %p175, %p176
      %p178 = scmp.ne.s32.totalorder %s170, %s172
      %p179 = scmp.eq.s32.totalorder %s26, 1
      %p180 = por %p178, %p179
      %p181 = scmp.ne.s32.totalorder %s172, %s173
      %p182 = scmp.eq.s32.totalorder %s26, 0
      %p183 = por %p181, %p182
      %p184 = scmp.ne.s32.totalorder %s172, %s173
      %p185 = scmp.eq.s32.totalorder %s27, 1
      %p186 = por %p184, %p185
      %p188 = scmp.ne.s32.totalorder %s173, %s187
      %p189 = scmp.eq.s32.totalorder %s27, 0
      %p190 = por %p188, %p189
      %s192 = sadd.s32 %s191, 1
      %p195 = scmp.eq.s32.totalorder %s21, 1
      %p196 = scmp.ne.s32.totalorder %s191, %s193
      %p197 = scmp.eq.s32.totalorder %s21, 0
      %p198 = por %p196, %p197
      %p199 = scmp.ne.s32.totalorder %s191, %s193
      %p200 = scmp.eq.s32.totalorder %s26, 1
      %p201 = por %p199, %p200
      %p202 = scmp.ne.s32.totalorder %s193, %s194
      %p203 = scmp.eq.s32.totalorder %s26, 0
      %p204 = por %p202, %p203
      %p205 = scmp.ne.s32.totalorder %s193, %s194
      %p206 = scmp.eq.s32.totalorder %s27, 1
      %p207 = por %p205, %p206
      %p209 = scmp.ne.s32.totalorder %s194, %s208
      %p210 = scmp.eq.s32.totalorder %s27, 0
      %p211 = por %p209, %p210
      %s213 = sadd.s32 %s212, 1
      %p216 = scmp.eq.s32.totalorder %s21, 1
      %p217 = scmp.ne.s32.totalorder %s212, %s214
      %p218 = scmp.eq.s32.totalorder %s21, 0
      %p219 = por %p217, %p218
      %p220 = scmp.ne.s32.totalorder %s212, %s214
      %p221 = scmp.eq.s32.totalorder %s26, 1
      %p222 = por %p220, %p221
      %p223 = scmp.ne.s32.totalorder %s214, %s215
      %p224 = scmp.eq.s32.totalorder %s26, 0
      %p225 = por %p223, %p224
      %p226 = scmp.ne.s32.totalorder %s214, %s215
      %p227 = scmp.eq.s32.totalorder %s27, 1
      %p228 = por %p226, %p227
      %p230 = scmp.ne.s32.totalorder %s215, %s229
      %p231 = scmp.eq.s32.totalorder %s27, 0
      %p232 = por %p230, %p231
      %s234 = sadd.s32 %s233, 1
      %p237 = scmp.eq.s32.totalorder %s21, 1
      %p238 = scmp.ne.s32.totalorder %s233, %s235
      %p239 = scmp.eq.s32.totalorder %s21, 0
      %p240 = por %p238, %p239
      %p241 = scmp.ne.s32.totalorder %s233, %s235
      %p242 = scmp.eq.s32.totalorder %s26, 1
      %p243 = por %p241, %p242
      %p244 = scmp.ne.s32.totalorder %s235, %s236
      %p245 = scmp.eq.s32.totalorder %s26, 0
      %p246 = por %p244, %p245
      %p247 = scmp.ne.s32.totalorder %s235, %s236
      %p248 = scmp.eq.s32.totalorder %s27, 1
      %p249 = por %p247, %p248
      %p251 = scmp.ne.s32.totalorder %s236, %s250
      %p252 = scmp.eq.s32.totalorder %s27, 0
      %p253 = por %p251, %p252
      %s254 = ssub.s32 %s21, %s28
      %p255 = scmp.eq.s32.totalorder %s254, 0
      %s257 = sadd.s32 %s256, 1
      %s258 = scalar_select %p255, %s256, %s257
      %p261 = pneg %p255
      %p262 = scmp.eq.s32.totalorder %s21, 1
      %p263 = por %p261, %p262
      %p264 = scmp.ne.s32.totalorder %s256, %s259
      %p265 = scmp.eq.s32.totalorder %s21, 0
      %p266 = por %p264, %p265
      %p267 = scmp.ne.s32.totalorder %s256, %s259
      %p268 = scmp.eq.s32.totalorder %s26, 1
      %p269 = por %p267, %p268
      %p270 = scmp.ne.s32.totalorder %s259, %s260
      %p271 = scmp.eq.s32.totalorder %s26, 0
      %p272 = por %p270, %p271
      %p273 = scmp.ne.s32.totalorder %s259, %s260
      %p274 = scmp.eq.s32.totalorder %s27, 1
      %p275 = por %p273, %p274
      %p277 = scmp.ne.s32.totalorder %s260, %s276
      %p278 = scmp.eq.s32.totalorder %s27, 0
      %p279 = por %p277, %p278
      %p280 = scmp.le.s32.totalorder 1, %s21
      %p281 = scmp.lt.s32.totalorder %s21, 3
      %p282 = pnand %p280, %p281
      %p283 = pneg %p282
      // Predicated region
      $region9: #{tpu_custom_call.1} parent=5 // pred_check
        _
      $region10: #{tpu_custom_call.1} parent=5 // pred_check_branch
        %285 = sbr.rel (%p282) target = $region12
      $region11: #{tpu_custom_call.1} parent=5 // pred_region
        %s286 = ssub.s32 %s21, 1
        // Predicated region
        $region13: #{tpu_custom_call.1} parent=11 // pred_check
          %p287 = pneg %p120
        $region14: #{tpu_custom_call.1} parent=11 // pred_check_branch
          %289 = sbr.rel (%p287) target = $region16
        $region15: #{tpu_custom_call.1} parent=11 // pred_region
          _
        $region16: #{tpu_custom_call.1} parent=11 // pred_fallthru
          _
        // Predicated region
        $region17: #{tpu_custom_call.1} parent=11 // pred_check
          %p290 = pneg %p141
        $region18: #{tpu_custom_call.1} parent=11 // pred_check_branch
          %292 = sbr.rel (%p290) target = $region20
        $region19: #{tpu_custom_call.1} parent=11 // pred_region
          _
        $region20: #{tpu_custom_call.1} parent=11 // pred_fallthru
          _
        // Predicated region
        $region21: #{tpu_custom_call.1} parent=11 // pred_check
          %p293 = pneg %p162
        $region22: #{tpu_custom_call.1} parent=11 // pred_check_branch
          %295 = sbr.rel (%p293) target = $region24
        $region23: #{tpu_custom_call.1} parent=11 // pred_region
          %297 = vsyncadd [#allocation3], 0
          %s298 = sshll.u32 %s5, 4
          %s299 = int_to_ptr.hbm [resolvable:$true] %s298
          %s300 = sshll.u32 [#allocation2], 4
          %s301 = int_to_ptr.vmem [resolvable:$true] %s300
          %306 = dma.hbm_to_vmem [thread:$0]  %s299, 8192, %s301, [#allocation3], 512, 512, 32
        $region24: #{tpu_custom_call.1} parent=11 // pred_fallthru
          _
        // Predicated region
        $region25: #{tpu_custom_call.1} parent=11 // pred_check
          %p307 = pneg %p183
        $region26: #{tpu_custom_call.1} parent=11 // pred_check_branch
          %309 = sbr.rel (%p307) target = $region28
        $region27: #{tpu_custom_call.1} parent=11 // pred_region
          _
        $region28: #{tpu_custom_call.1} parent=11 // pred_fallthru
          _
        // Predicated region
        $region29: #{tpu_custom_call.1} parent=11 // pred_check
          %p310 = pneg %p204
        $region30: #{tpu_custom_call.1} parent=11 // pred_check_branch
          %312 = sbr.rel (%p310) target = $region32
        $region31: #{tpu_custom_call.1} parent=11 // pred_region
          %314 = vsyncadd [#allocation6], 0
          %s315 = sshll.u32 %s7, 4
          %s316 = int_to_ptr.hbm [resolvable:$true] %s315
          %s317 = sshll.u32 [#allocation5], 4
          %s318 = int_to_ptr.vmem [resolvable:$true] %s317
          %323 = dma.hbm_to_vmem [thread:$0]  %s316, 6144, %s318, [#allocation6], 64, 64, 4
        $region32: #{tpu_custom_call.1} parent=11 // pred_fallthru
          _
        // Predicated region
        $region33: #{tpu_custom_call.1} parent=11 // pred_check
          %p324 = pneg %p225
        $region34: #{tpu_custom_call.1} parent=11 // pred_check_branch
          %326 = sbr.rel (%p324) target = $region36
        $region35: #{tpu_custom_call.1} parent=11 // pred_region
          %328 = vsyncadd [#allocation6], 0
          %s329 = sshll.u32 %s8, 4
          %s330 = int_to_ptr.hbm [resolvable:$true] %s329
          %s331 = sshll.u32 [#allocation7], 4
          %s332 = int_to_ptr.vmem [resolvable:$true] %s331
          %337 = dma.hbm_to_vmem [thread:$0]  %s330, 8192, %s332, [#allocation6], 64, 64, 4
        $region36: #{tpu_custom_call.1} parent=11 // pred_fallthru
          _
        // Predicated region
        $region37: #{tpu_custom_call.1} parent=11 // pred_check
          %p338 = pneg %p246
        $region38: #{tpu_custom_call.1} parent=11 // pred_check_branch
          %340 = sbr.rel (%p338) target = $region40
        $region39: #{tpu_custom_call.1} parent=11 // pred_region
          _
        $region40: #{tpu_custom_call.1} parent=11 // pred_fallthru
          _
      $region12: #{tpu_custom_call.1} parent=5 // pred_fallthru
        _
      %p341 = scmp.lt.s32.totalorder %s21, 2
      // Predicated region
      $region41: #{tpu_custom_call.1} parent=5 // pred_check
        %p342 = pneg %p341
      $region42: #{tpu_custom_call.1} parent=5 // pred_check_branch
        %344 = sbr.rel (%p342) target = $region44
      $region43: #{tpu_custom_call.1} parent=5 // pred_region
        // Predicated region
        $region45: #{tpu_custom_call.1} parent=43 // pred_check
          %p345 = pneg %p41
        $region46: #{tpu_custom_call.1} parent=43 // pred_check_branch
          %347 = sbr.rel (%p345) target = $region48
        $region47: #{tpu_custom_call.1} parent=43 // pred_region
          %p348 = scmp.lt.s32.totalorder %s21, 1
          %s349 = scalar_select %p348, %s21, 1
          %s350 = smul.addr %s349, 8
          %s351 = smul.addr %s350, 4
          %s352 = scalar_lea.vmem %s0, %s351
        $region48: #{tpu_custom_call.1} parent=43 // pred_fallthru
          _
        // Predicated region
        $region49: #{tpu_custom_call.1} parent=43 // pred_check
          %p353 = pneg %p67
        $region50: #{tpu_custom_call.1} parent=43 // pred_check_branch
          %355 = sbr.rel (%p353) target = $region52
        $region51: #{tpu_custom_call.1} parent=43 // pred_region
          %p356 = scmp.lt.s32.totalorder %s21, 1
          %s357 = scalar_select %p356, %s21, 1
          %s358 = smul.addr %s357, 6
          %s359 = smul.addr %s358, 4
          %s360 = scalar_lea.vmem %s1, %s359
        $region52: #{tpu_custom_call.1} parent=43 // pred_fallthru
          _
        // Predicated region
        $region53: #{tpu_custom_call.1} parent=43 // pred_check
          %p361 = pneg %p93
        $region54: #{tpu_custom_call.1} parent=43 // pred_check_branch
          %363 = sbr.rel (%p361) target = $region56
        $region55: #{tpu_custom_call.1} parent=43 // pred_region
          %p364 = scmp.lt.s32.totalorder %s21, 1
          %s365 = scalar_select %p364, %s21, 1
          %s366 = scalar_lea.vmem %s2, %s365
        $region56: #{tpu_custom_call.1} parent=43 // pred_fallthru
          _
      $region44: #{tpu_custom_call.1} parent=5 // pred_fallthru
        _
      %p367 = scmp.le.s32.totalorder 1, %s21
      %p368 = scmp.lt.s32.totalorder %s21, 3
      %p369 = pnand %p367, %p368
      %p370 = pneg %p369
      // Predicated region
      $region57: #{tpu_custom_call.1} parent=5 // pred_check
        _
      $region58: #{tpu_custom_call.1} parent=5 // pred_check_branch
        %372 = sbr.rel (%p369) target = $region60
      $region59: #{tpu_custom_call.1} parent=5 // pred_region
        %s373 = ssub.s32 %s21, 1
        // Predicated region
        $region61: #{tpu_custom_call.1} parent=59 // pred_check
          %p374 = pneg %p162
        $region62: #{tpu_custom_call.1} parent=59 // pred_check_branch
          %376 = sbr.rel (%p374) target = $region64
        $region63: #{tpu_custom_call.1} parent=59 // pred_region
          %378 = dma.done [#allocation3], 8192
        $region64: #{tpu_custom_call.1} parent=59 // pred_fallthru
          _
        // Predicated region
        $region65: #{tpu_custom_call.1} parent=59 // pred_check
          %p379 = pneg %p204
        $region66: #{tpu_custom_call.1} parent=59 // pred_check_branch
          %381 = sbr.rel (%p379) target = $region68
        $region67: #{tpu_custom_call.1} parent=59 // pred_region
          %383 = dma.done [#allocation6], 6144
        $region68: #{tpu_custom_call.1} parent=59 // pred_fallthru
          _
        // Predicated region
        $region69: #{tpu_custom_call.1} parent=59 // pred_check
          %p384 = pneg %p225
        $region70: #{tpu_custom_call.1} parent=59 // pred_check_branch
          %386 = sbr.rel (%p384) target = $region72
        $region71: #{tpu_custom_call.1} parent=59 // pred_region
          %388 = dma.done [#allocation6], 8192
        $region72: #{tpu_custom_call.1} parent=59 // pred_fallthru
          _
        %p389 = scmp.lt.s32.totalorder %s26, 1
        %s390 = scalar_select %p389, %s26, 1
        %s391 = smul.addr %s390, 8
        %s392 = smul.addr %s391, 4
        %s393 = scalar_lea.vmem %s0, %s392
        %p394 = pneg %p47
        %p395 = pneg %p44
        %p396 = scmp.lt.s32.totalorder %s26, 1
        %s397 = scalar_select %p396, %s26, 1
        %s398 = smul.addr %s397, 6
        %s399 = smul.addr %s398, 4
        %s400 = scalar_lea.vmem %s1, %s399
        %p401 = pneg %p73
        %p402 = pneg %p70
        %p403 = scmp.lt.s32.totalorder %s26, 1
        %s404 = scalar_select %p403, %s26, 1
        %s405 = scalar_lea.vmem %s2, %s404
        %p406 = pneg %p99
        %p407 = pneg %p96
        %p408 = pneg %p120
        %p409 = pneg %p117
        %p410 = pneg %p141
        %p411 = pneg %p138
        %p412 = pneg %p162
        %p413 = pneg %p159
        %p414 = pneg %p183
        %p415 = pneg %p180
        %p416 = pneg %p204
        %p417 = pneg %p201
        %p418 = pneg %p225
        %p419 = pneg %p222
        %p420 = pneg %p246
        %p421 = pneg %p243
        %p422 = pneg %p272
        %p423 = pneg %p269
        %s424 = sand.u32 %s259, 1
        %s425 = scalar_lea.sflag [#allocation4], %s424
        %s426 = sand.u32 %s259, 1
        %s427 = scalar_lea.vmem [#allocation8], %s426
        %p428 = scmp.lt.s32.totalorder %s26, 1
        %s429 = scalar_select %p428, %s26, 1
        %s430 = smul.addr %s429, 8
        %s431 = smul.addr %s430, 4
        %s432 = scalar_lea.vmem %s0, %s431
        %p433 = scmp.lt.s32.totalorder %s26, 1
        %s434 = scalar_select %p433, %s26, 1
        %s435 = smul.addr %s434, 6
        %s436 = smul.addr %s435, 4
        %s437 = scalar_lea.vmem %s1, %s436
        %p438 = scmp.lt.s32.totalorder %s26, 1
        %s439 = scalar_select %p438, %s26, 1
        %s440 = scalar_lea.vmem %s2, %s439
        %v443 = vld [vmem:[%s432] sm:$0xf]
        %v444 = vld [vmem:[%s432 + $0x4] sm:$0xf]
        %v445 = vld [vmem:[%s432 + $0x8] sm:$0xf]
        %v446 = vld [vmem:[%s432 + $0xc] sm:$0xf]
        %v447 = vld [vmem:[%s432 + $0x10] sm:$0xf]
        %v448 = vld [vmem:[%s432 + $0x14] sm:$0xf]
        %v449 = vld [vmem:[%s432 + $0x18] sm:$0xf]
        %v450 = vld [vmem:[%s432 + $0x1c] sm:$0xf]
        %v451 = vld [vmem:[%s3] sm:$0xf]
        %v452 = vld [vmem:[%s3 + $0x4] sm:$0xf]
        %v453 = vld [vmem:[%s3 + $0x8] sm:$0xf]
        %v454 = vld [vmem:[%s3 + $0xc] sm:$0x3]
        %v455 = vld [vmem:[%s4] sm:$0x1]
        %v457 = vperm.slane %v455, 0
        %v467 = vunpack.c.l.b16 %v443
        %v468 = vunpack.c.l.b16 %v444
        %v469 = vunpack.c.l.b16 %v445
        %v470 = vunpack.c.l.b16 %v446
        %v471 = vunpack.c.l.b16 %v447
        %v472 = vunpack.c.l.b16 %v448
        %v473 = vunpack.c.l.b16 %v449
        %v474 = vunpack.c.l.b16 %v450
        %v475 = vpack.c.b16 %v468, %v467
        %v476 = vpack.c.b16 %v470, %v469
        %v477 = vpack.c.b16 %v472, %v471
        %v478 = vpack.c.b16 %v474, %v473
        %v483 = vunpack.c.l.b16 %v451
        %v484 = vunpack.c.l.b16 %v452
        %v485 = vunpack.c.l.b16 %v453
        %v486 = vunpack.c.l.b16 %v454
        %v487 = vpack.c.b16 %v484, %v483
        %v488 = vpack.c.b16 %v486, %v485
        %vm490 = vcmask 220160
        %v492 = vsel %vm490, %v475, 0
        %v495 = vsel %vm490, %v476, 0
        %v498 = vsel %vm490, %v477, 0
        %v501 = vsel %vm490, %v478, 0
        %vm503 = vcmask 1044480
        %vm504 = vcmask 1045504
        %v505 = vsel %vm503, 4294967295, 65535
        %v506 = vsel %vm504, %v505, 0
        %v508 = vand.u32 %v488, %v506
        %510 = vmatpush.bf16.msra.mxu0 0
        %511 = vmatpush.bf16.msra.mxu0 0
        %512 = vmatpush.bf16.msra.mxu0 0
        %513 = vmatpush.bf16.msra.mxu0 0
        %514 = vmatpush.bf16.msra.mxu0 0
        %515 = vmatpush.bf16.msra.mxu0 0
        %516 = vmatpush.bf16.msra.mxu0 %v508
        %517 = vmatpush.bf16.msra.mxu0 %v487
        %518 = vmatmul.bf16.gmra.mxu0 %v492
        %v519 = vpop.f32.mrf.mxu0
        %v520 = vadd.f32 %v457, %v519
        %v521 = vpop.f32.mrf.mxu0
        %v522 = vadd.f32 %v457, %v521
        %523 = vmatmul.bf16.gmra.mxu0 %v495
        %v524 = vpop.f32.mrf.mxu0
        %v525 = vadd.f32 %v457, %v524
        %v526 = vpop.f32.mrf.mxu0
        %v527 = vadd.f32 %v457, %v526
        %528 = vmatmul.bf16.gmra.mxu0 %v498
        %v529 = vpop.f32.mrf.mxu0
        %v530 = vadd.f32 %v457, %v529
        %v531 = vpop.f32.mrf.mxu0
        %v532 = vadd.f32 %v457, %v531
        %533 = vmatmul.bf16.gmra.mxu0 %v501
        %v534 = vpop.f32.mrf.mxu0
        %v535 = vadd.f32 %v457, %v534
        %v536 = vpop.f32.mrf.mxu0
        %v537 = vadd.f32 %v457, %v536
        %538 = vdwg.mxu0
        %v539 = vmax.f32 %v520, 0.0
        %v540 = vmax.f32 %v522, 0.0
        %v541 = vmax.f32 %v525, 0.0
        %v542 = vmax.f32 %v527, 0.0
        %v543 = vmax.f32 %v530, 0.0
        %v544 = vmax.f32 %v532, 0.0
        %v545 = vmax.f32 %v535, 0.0
        %v546 = vmax.f32 %v537, 0.0
        %v547 = vpack.c.bf16 %v539, %v539
        %v548 = vpack.c.bf16 %v540, %v540
        %v549 = vpack.c.bf16 %v541, %v541
        %v550 = vpack.c.bf16 %v542, %v542
        %v551 = vpack.c.bf16 %v543, %v543
        %v552 = vpack.c.bf16 %v544, %v544
        %v553 = vpack.c.bf16 %v545, %v545
        %v554 = vpack.c.bf16 %v546, %v546
        %v555 = vunpack.c.l.bf16 %v547
        %v556 = vunpack.c.l.bf16 %v549
        %v557 = vunpack.c.l.bf16 %v551
        %v558 = vunpack.c.l.bf16 %v553
        %v559 = vunpack.c.l.bf16 4286644096
        %v560 = vunpack.c.l.bf16 %v548
        %v561 = vunpack.c.l.bf16 %v550
        %v562 = vunpack.c.l.bf16 %v552
        %v563 = vmax.f32 %v555, %v559
        %v564 = vmax.f32 %v556, %v560
        %v565 = vmax.f32 %v557, %v561
        %v566 = vmax.f32 %v558, %v562
        %v567 = vpack.c.bf16 %v563, %v563
        %v568 = vpack.c.bf16 %v564, %v564
        %v569 = vpack.c.bf16 %v565, %v565
        %v570 = vpack.c.bf16 %v566, %v566
        %v571 = vunpack.c.l.bf16 %v567
        %v572 = vunpack.c.l.bf16 %v568
        %v573 = vunpack.c.l.bf16 %v569
        %v574 = vunpack.c.l.bf16 %v570
        %v575 = vunpack.c.l.bf16 %v554
        %v576 = vmax.f32 %v571, %v560
        %v577 = vmax.f32 %v572, %v561
        %v578 = vmax.f32 %v573, %v562
        %v579 = vmax.f32 %v574, %v575
        %v580 = vpack.c.bf16 %v576, %v576
        %v581 = vpack.c.bf16 %v577, %v577
        %v582 = vpack.c.bf16 %v578, %v578
        %v583 = vpack.c.bf16 %v579, %v579
        %v588 = vunpack.c.l.b16 %v580
        %v589 = vunpack.c.l.b16 %v581
        %v590 = vunpack.c.l.b16 %v582
        %v591 = vunpack.c.l.b16 %v583
        %v592 = vpack.c.b16 %v588, %v588
        %v593 = vpack.c.b16 %v589, %v589
        %v594 = vpack.c.b16 %v590, %v590
        %v595 = vpack.c.b16 %v591, %v591
        %v597 = vshrl.u32 %v592, 16
        %v599 = vrot.slane %v597, 7
        %v600 = vshll.u32 %v592, 16
        %v602 = vor.u32 %v599, %v600
        %v604 = vshrl.u32 %v593, 16
        %v606 = vrot.slane %v604, 7
        %v607 = vshll.u32 %v593, 16
        %v609 = vor.u32 %v606, %v607
        %v611 = vshrl.u32 %v594, 16
        %v613 = vrot.slane %v611, 7
        %v614 = vshll.u32 %v594, 16
        %v616 = vor.u32 %v613, %v614
        %v618 = vshrl.u32 %v595, 16
        %v620 = vrot.slane %v618, 7
        %v621 = vshll.u32 %v595, 16
        %v623 = vor.u32 %v620, %v621
        %vm628 = vcmask 1040384
        %vm629 = vsmask.f32 256
        %vm630 = vmand %vm628, %vm629
        %v631 = vsel %vm630, 4286644096, %v602
        %v632 = vsel %vm630, 4286644096, %v609
        %v633 = vsel %vm630, 4286644096, %v616
        %v634 = vsel %vm630, 4286644096, %v623
        %v635 = vrot.slane %v600, 1
        %v636 = vor.u32 %v597, %v635
        %v637 = vrot.slane %v607, 1
        %v638 = vor.u32 %v604, %v637
        %v639 = vrot.slane %v614, 1
        %v640 = vor.u32 %v611, %v639
        %v641 = vrot.slane %v621, 1
        %v642 = vor.u32 %v618, %v641
        %vm647 = vcmask 1043456
        %vm648 = vsmask.f32 3328
        %vm649 = vmand %vm647, %vm648
        %v650 = vsel %vm649, %v636, 4286644096
        %v651 = vsel %vm649, %v638, 4286644096
        %v652 = vsel %vm649, %v640, 4286644096
        %v653 = vsel %vm649, %v642, 4286644096
        %v654 = vunpack.c.l.bf16 %v580
        %v655 = vunpack.c.l.bf16 %v581
        %v656 = vunpack.c.l.bf16 %v582
        %v657 = vunpack.c.l.bf16 %v583
        %v658 = vunpack.c.l.bf16 %v631
        %v659 = vunpack.c.l.bf16 %v632
        %v660 = vunpack.c.l.bf16 %v633
        %v661 = vunpack.c.l.bf16 %v634
        %v662 = vmax.f32 %v654, %v658
        %v663 = vmax.f32 %v655, %v659
        %v664 = vmax.f32 %v656, %v660
        %v665 = vmax.f32 %v657, %v661
        %v666 = vpack.c.bf16 %v662, %v662
        %v667 = vpack.c.bf16 %v663, %v663
        %v668 = vpack.c.bf16 %v664, %v664
        %v669 = vpack.c.bf16 %v665, %v665
        %v670 = vunpack.c.l.bf16 %v666
        %v671 = vunpack.c.l.bf16 %v667
        %v672 = vunpack.c.l.bf16 %v668
        %v673 = vunpack.c.l.bf16 %v669
        %v674 = vunpack.c.l.bf16 %v650
        %v675 = vunpack.c.l.bf16 %v651
        %v676 = vunpack.c.l.bf16 %v652
        %v677 = vunpack.c.l.bf16 %v653
        %v678 = vmax.f32 %v670, %v674
        %v679 = vmax.f32 %v671, %v675
        %v680 = vmax.f32 %v672, %v676
        %v681 = vmax.f32 %v673, %v677
        %v682 = vpack.c.bf16 %v678, %v678
        %v683 = vpack.c.bf16 %v679, %v679
        %v684 = vpack.c.bf16 %v680, %v680
        %v685 = vpack.c.bf16 %v681, %v681
        %v690 = vrot.slane %v682, 3
        %v691 = vrot.slane %v683, 3
        %v692 = vrot.slane %v684, 3
        %v693 = vrot.slane %v685, 3
        %vm694 = vcmask 1040384
        %v697 = vsel %vm694, %v682, %v690
        %vm698 = vcmask 1041409
        %v699 = vsel %vm698, %v682, %v690
        %v701 = vrot.slane %v699, 1
        %vm702 = vcmask 1042434
        %v703 = vsel %vm702, %v682, %v690
        %v705 = vrot.slane %v703, 2
        %vm706 = vcmask 1043459
        %v707 = vsel %vm706, %v682, %v690
        %v709 = vrot.slane %v707, 3
        %v712 = vsel %vm694, %v683, %v691
        %v713 = vsel %vm698, %v683, %v691
        %v715 = vrot.slane %v713, 1
        %v716 = vsel %vm702, %v683, %v691
        %v718 = vrot.slane %v716, 2
        %v719 = vsel %vm706, %v683, %v691
        %v721 = vrot.slane %v719, 3
        %v724 = vsel %vm694, %v684, %v692
        %v725 = vsel %vm698, %v684, %v692
        %v727 = vrot.slane %v725, 1
        %v728 = vsel %vm702, %v684, %v692
        %v730 = vrot.slane %v728, 2
        %v731 = vsel %vm706, %v684, %v692
        %v733 = vrot.slane %v731, 3
        %v736 = vsel %vm694, %v685, %v693
        %v737 = vsel %vm698, %v685, %v693
        %v739 = vrot.slane %v737, 1
        %v740 = vsel %vm702, %v685, %v693
        %v742 = vrot.slane %v740, 2
        %v743 = vsel %vm706, %v685, %v693
        %v745 = vrot.slane %v743, 3
        %v746 = vld [vmem:[#allocation2] sm:$0xff]
        %v747 = vld [vmem:[#allocation2 + $0x8] sm:$0xff]
        %v748 = vld [vmem:[#allocation2 + $0x10] sm:$0xff]
        %v749 = vld [vmem:[#allocation2 + $0x18] sm:$0xff]
        %v750 = vld [vmem:[#allocation2 + $0x20] sm:$0xff]
        %v751 = vld [vmem:[#allocation2 + $0x28] sm:$0xff]
        %v752 = vld [vmem:[#allocation2 + $0x30] sm:$0xff]
        %v753 = vld [vmem:[#allocation2 + $0x38] sm:$0xff]
        %v754 = vld [vmem:[#allocation2 + $0x40] sm:$0xff]
        %v755 = vld [vmem:[#allocation2 + $0x48] sm:$0xff]
        %v756 = vld [vmem:[#allocation2 + $0x50] sm:$0xff]
        %v757 = vld [vmem:[#allocation2 + $0x58] sm:$0xff]
        %v758 = vld [vmem:[#allocation2 + $0x60] sm:$0xff]
        %v759 = vld [vmem:[#allocation2 + $0x68] sm:$0xff]
        %v760 = vld [vmem:[#allocation2 + $0x70] sm:$0xff]
        %v761 = vld [vmem:[#allocation2 + $0x78] sm:$0xff]
        %v762 = vld [vmem:[#allocation2 + $0x80] sm:$0xff]
        %v763 = vld [vmem:[#allocation2 + $0x88] sm:$0xff]
        %v764 = vld [vmem:[#allocation2 + $0x90] sm:$0xff]
        %v765 = vld [vmem:[#allocation2 + $0x98] sm:$0xff]
        %v766 = vld [vmem:[#allocation2 + $0xa0] sm:$0xff]
        %v767 = vld [vmem:[#allocation2 + $0xa8] sm:$0xff]
        %v768 = vld [vmem:[#allocation2 + $0xb0] sm:$0xff]
        %v769 = vld [vmem:[#allocation2 + $0xb8] sm:$0xff]
        %v770 = vld [vmem:[#allocation2 + $0xc0] sm:$0xff]
        %v771 = vld [vmem:[#allocation2 + $0xc8] sm:$0xff]
        %v772 = vld [vmem:[#allocation2 + $0xd0] sm:$0xff]
        %v773 = vld [vmem:[#allocation2 + $0xd8] sm:$0xff]
        %v774 = vld [vmem:[#allocation2 + $0xe0] sm:$0xff]
        %v775 = vld [vmem:[#allocation2 + $0xe8] sm:$0xff]
        %v776 = vld [vmem:[#allocation2 + $0xf0] sm:$0xff]
        %v777 = vld [vmem:[#allocation2 + $0xf8] sm:$0xff]
        %v778 = vld [vmem:[#allocation2 + $0x100] sm:$0xff]
        %v779 = vld [vmem:[#allocation2 + $0x108] sm:$0xff]
        %v780 = vld [vmem:[#allocation2 + $0x110] sm:$0xff]
        %v781 = vld [vmem:[#allocation2 + $0x118] sm:$0xff]
        %v782 = vld [vmem:[#allocation2 + $0x120] sm:$0xff]
        %v783 = vld [vmem:[#allocation2 + $0x128] sm:$0xff]
        %v784 = vld [vmem:[#allocation2 + $0x130] sm:$0xff]
        %v785 = vld [vmem:[#allocation2 + $0x138] sm:$0xff]
        %v786 = vld [vmem:[#allocation2 + $0x140] sm:$0xff]
        %v787 = vld [vmem:[#allocation2 + $0x148] sm:$0xff]
        %v788 = vld [vmem:[#allocation2 + $0x150] sm:$0xff]
        %v789 = vld [vmem:[#allocation2 + $0x158] sm:$0xff]
        %v790 = vld [vmem:[#allocation2 + $0x160] sm:$0xff]
        %v791 = vld [vmem:[#allocation2 + $0x168] sm:$0xff]
        %v792 = vld [vmem:[#allocation2 + $0x170] sm:$0xff]
        %v793 = vld [vmem:[#allocation2 + $0x178] sm:$0xff]
        %v794 = vld [vmem:[#allocation2 + $0x180] sm:$0xff]
        %v795 = vld [vmem:[#allocation2 + $0x188] sm:$0xff]
        %v796 = vld [vmem:[#allocation2 + $0x190] sm:$0xff]
        %v797 = vld [vmem:[#allocation2 + $0x198] sm:$0xff]
        %v798 = vld [vmem:[#allocation2 + $0x1a0] sm:$0xff]
        %v799 = vld [vmem:[#allocation2 + $0x1a8] sm:$0xff]
        %v800 = vld [vmem:[#allocation2 + $0x1b0] sm:$0xff]
        %v801 = vld [vmem:[#allocation2 + $0x1b8] sm:$0xff]
        %v802 = vld [vmem:[#allocation2 + $0x1c0] sm:$0xff]
        %v803 = vld [vmem:[#allocation2 + $0x1c8] sm:$0xff]
        %v804 = vld [vmem:[#allocation2 + $0x1d0] sm:$0xff]
        %v805 = vld [vmem:[#allocation2 + $0x1d8] sm:$0xff]
        %v806 = vld [vmem:[#allocation2 + $0x1e0] sm:$0xff]
        %v807 = vld [vmem:[#allocation2 + $0x1e8] sm:$0xff]
        %v808 = vld [vmem:[#allocation2 + $0x1f0] sm:$0xff]
        %v809 = vld [vmem:[#allocation2 + $0x1f8] sm:$0xff]
        %v810 = vld [vmem:[%s6] sm:$0xff]
        %v812 = vperm.slane %v810, 0
        %v813 = vperm.slane %v810, 1
        %v814 = vperm.slane %v810, 2
        %v815 = vperm.slane %v810, 3
        %v816 = vperm.slane %v810, 4
        %v817 = vperm.slane %v810, 5
        %v818 = vperm.slane %v810, 6
        %v819 = vperm.slane %v810, 7
        %828 = vst [vmem:[#allocation1] ss:$9 sm:$0xff] %v697
        %v829 = vld [vmem:[#allocation1] sm:$0xff]
        %832 = vst [vmem:[#allocation1] ss:$9 sm:$0xff] %v701
        %v833 = vld [vmem:[#allocation1] sm:$0xff]
        %836 = vst [vmem:[#allocation1] ss:$9 sm:$0xff] %v705
        %v837 = vld [vmem:[#allocation1] sm:$0xff]
        %840 = vst [vmem:[#allocation1] ss:$9 sm:$0xff] %v709
        %v841 = vld [vmem:[#allocation1] sm:$0xff]
        %843 = vst [vmem:[#allocation1] ss:$9 sm:$0xff] %v712
        %v844 = vld [vmem:[#allocation1] sm:$0xff]
        %847 = vst [vmem:[#allocation1] ss:$9 sm:$0xff] %v715
        %v848 = vld [vmem:[#allocation1] sm:$0xff]
        %851 = vst [vmem:[#allocation1] ss:$9 sm:$0xff] %v718
        %v852 = vld [vmem:[#allocation1] sm:$0xff]
        %855 = vst [vmem:[#allocation1] ss:$9 sm:$0xff] %v721
        %v856 = vld [vmem:[#allocation1] sm:$0xff]
        %858 = vst [vmem:[#allocation1] ss:$9 sm:$0xff] %v724
        %v859 = vld [vmem:[#allocation1] sm:$0xff]
        %862 = vst [vmem:[#allocation1] ss:$9 sm:$0xff] %v727
        %v863 = vld [vmem:[#allocation1] sm:$0xff]
        %866 = vst [vmem:[#allocation1] ss:$9 sm:$0xff] %v730
        %v867 = vld [vmem:[#allocation1] sm:$0xff]
        %870 = vst [vmem:[#allocation1] ss:$9 sm:$0xff] %v733
        %v871 = vld [vmem:[#allocation1] sm:$0xff]
        %873 = vst [vmem:[#allocation1] ss:$9 sm:$0xff] %v736
        %v874 = vld [vmem:[#allocation1] sm:$0xff]
        %877 = vst [vmem:[#allocation1] ss:$9 sm:$0xff] %v739
        %v878 = vld [vmem:[#allocation1] sm:$0xff]
        %881 = vst [vmem:[#allocation1] ss:$9 sm:$0xff] %v742
        %v882 = vld [vmem:[#allocation1] sm:$0xff]
        %885 = vst [vmem:[#allocation1] ss:$9 sm:$0xff] %v745
        %v886 = vld [vmem:[#allocation1] sm:$0xff]
        %v888 = vunpack.c.l.b16 %v829
        %v889 = vunpack.c.l.b16 %v833
        %v890 = vunpack.c.l.b16 %v837
        %v891 = vunpack.c.l.b16 %v841
        %v892 = vunpack.c.l.b16 %v844
        %v893 = vunpack.c.l.b16 %v848
        %v894 = vunpack.c.l.b16 %v852
        %v895 = vunpack.c.l.b16 %v856
        %v896 = vunpack.c.l.b16 %v859
        %v897 = vunpack.c.l.b16 %v863
        %v898 = vunpack.c.l.b16 %v867
        %v899 = vunpack.c.l.b16 %v871
        %v900 = vunpack.c.l.b16 %v874
        %v901 = vunpack.c.l.b16 %v878
        %v902 = vunpack.c.l.b16 %v882
        %v903 = vunpack.c.l.b16 %v886
        %v904 = vrot.slane %v889, 7
        %v905 = vsel %vm698, %v904, %v888
        %v906 = vrot.slane %v890, 6
        %v907 = vsel %vm702, %v906, %v905
        %v908 = vrot.slane %v891, 5
        %v909 = vsel %vm706, %v908, %v907
        %v910 = vrot.slane %v892, 4
        %vm911 = vcmask 1044484
        %v912 = vsel %vm911, %v910, %v909
        %v913 = vrot.slane %v893, 3
        %vm914 = vcmask 1045509
        %v915 = vsel %vm914, %v913, %v912
        %v916 = vrot.slane %v894, 2
        %vm917 = vcmask 1046534
        %v918 = vsel %vm917, %v916, %v915
        %v919 = vrot.slane %v895, 1
        %vm920 = vcmask 1047559
        %v921 = vsel %vm920, %v919, %v918
        %v922 = vrot.slane %v897, 7
        %v923 = vsel %vm698, %v922, %v896
        %v924 = vrot.slane %v898, 6
        %v925 = vsel %vm702, %v924, %v923
        %v926 = vrot.slane %v899, 5
        %v927 = vsel %vm706, %v926, %v925
        %v928 = vrot.slane %v900, 4
        %v929 = vsel %vm911, %v928, %v927
        %v930 = vrot.slane %v901, 3
        %v931 = vsel %vm914, %v930, %v929
        %v932 = vrot.slane %v902, 2
        %v933 = vsel %vm917, %v932, %v931
        %v934 = vrot.slane %v903, 1
        %v935 = vsel %vm920, %v934, %v933
        %v936 = vpack.c.b16 %v935, %v921
        %v1002 = vunpack.c.l.b16 %v746
        %v1003 = vunpack.c.h.b16 %v746
        %v1004 = vunpack.c.l.b16 %v747
        %v1005 = vunpack.c.h.b16 %v747
        %v1006 = vunpack.c.l.b16 %v748
        %v1007 = vunpack.c.h.b16 %v748
        %v1008 = vunpack.c.l.b16 %v749
        %v1009 = vunpack.c.h.b16 %v749
        %v1010 = vunpack.c.l.b16 %v750
        %v1011 = vunpack.c.h.b16 %v750
        %v1012 = vunpack.c.l.b16 %v751
        %v1013 = vunpack.c.h.b16 %v751
        %v1014 = vunpack.c.l.b16 %v752
        %v1015 = vunpack.c.h.b16 %v752
        %v1016 = vunpack.c.l.b16 %v753
        %v1017 = vunpack.c.h.b16 %v753
        %v1018 = vunpack.c.l.b16 %v754
        %v1019 = vunpack.c.h.b16 %v754
        %v1020 = vunpack.c.l.b16 %v755
        %v1021 = vunpack.c.h.b16 %v755
        %v1022 = vunpack.c.l.b16 %v756
        %v1023 = vunpack.c.h.b16 %v756
        %v1024 = vunpack.c.l.b16 %v757
        %v1025 = vunpack.c.h.b16 %v757
        %v1026 = vunpack.c.l.b16 %v758
        %v1027 = vunpack.c.h.b16 %v758
        %v1028 = vunpack.c.l.b16 %v759
        %v1029 = vunpack.c.h.b16 %v759
        %v1030 = vunpack.c.l.b16 %v760
        %v1031 = vunpack.c.h.b16 %v760
        %v1032 = vunpack.c.l.b16 %v761
        %v1033 = vunpack.c.h.b16 %v761
        %v1034 = vunpack.c.l.b16 %v762
        %v1035 = vunpack.c.h.b16 %v762
        %v1036 = vunpack.c.l.b16 %v763
        %v1037 = vunpack.c.h.b16 %v763
        %v1038 = vunpack.c.l.b16 %v764
        %v1039 = vunpack.c.h.b16 %v764
        %v1040 = vunpack.c.l.b16 %v765
        %v1041 = vunpack.c.h.b16 %v765
        %v1042 = vunpack.c.l.b16 %v766
        %v1043 = vunpack.c.h.b16 %v766
        %v1044 = vunpack.c.l.b16 %v767
        %v1045 = vunpack.c.h.b16 %v767
        %v1046 = vunpack.c.l.b16 %v768
        %v1047 = vunpack.c.h.b16 %v768
        %v1048 = vunpack.c.l.b16 %v769
        %v1049 = vunpack.c.h.b16 %v769
        %v1050 = vunpack.c.l.b16 %v770
        %v1051 = vunpack.c.h.b16 %v770
        %v1052 = vunpack.c.l.b16 %v771
        %v1053 = vunpack.c.h.b16 %v771
        %v1054 = vunpack.c.l.b16 %v772
        %v1055 = vunpack.c.h.b16 %v772
        %v1056 = vunpack.c.l.b16 %v773
        %v1057 = vunpack.c.h.b16 %v773
        %v1058 = vunpack.c.l.b16 %v774
        %v1059 = vunpack.c.h.b16 %v774
        %v1060 = vunpack.c.l.b16 %v775
        %v1061 = vunpack.c.h.b16 %v775
        %v1062 = vunpack.c.l.b16 %v776
        %v1063 = vunpack.c.h.b16 %v776
        %v1064 = vunpack.c.l.b16 %v777
        %v1065 = vunpack.c.h.b16 %v777
        %v1066 = vunpack.c.l.b16 %v778
        %v1067 = vunpack.c.h.b16 %v778
        %v1068 = vunpack.c.l.b16 %v779
        %v1069 = vunpack.c.h.b16 %v779
        %v1070 = vunpack.c.l.b16 %v780
        %v1071 = vunpack.c.h.b16 %v780
        %v1072 = vunpack.c.l.b16 %v781
        %v1073 = vunpack.c.h.b16 %v781
        %v1074 = vunpack.c.l.b16 %v782
        %v1075 = vunpack.c.h.b16 %v782
        %v1076 = vunpack.c.l.b16 %v783
        %v1077 = vunpack.c.h.b16 %v783
        %v1078 = vunpack.c.l.b16 %v784
        %v1079 = vunpack.c.h.b16 %v784
        %v1080 = vunpack.c.l.b16 %v785
        %v1081 = vunpack.c.h.b16 %v785
        %v1082 = vunpack.c.l.b16 %v786
        %v1083 = vunpack.c.h.b16 %v786
        %v1084 = vunpack.c.l.b16 %v787
        %v1085 = vunpack.c.h.b16 %v787
        %v1086 = vunpack.c.l.b16 %v788
        %v1087 = vunpack.c.h.b16 %v788
        %v1088 = vunpack.c.l.b16 %v789
        %v1089 = vunpack.c.h.b16 %v789
        %v1090 = vunpack.c.l.b16 %v790
        %v1091 = vunpack.c.h.b16 %v790
        %v1092 = vunpack.c.l.b16 %v791
        %v1093 = vunpack.c.h.b16 %v791
        %v1094 = vunpack.c.l.b16 %v792
        %v1095 = vunpack.c.h.b16 %v792
        %v1096 = vunpack.c.l.b16 %v793
        %v1097 = vunpack.c.h.b16 %v793
        %v1098 = vunpack.c.l.b16 %v794
        %v1099 = vunpack.c.h.b16 %v794
        %v1100 = vunpack.c.l.b16 %v795
        %v1101 = vunpack.c.h.b16 %v795
        %v1102 = vunpack.c.l.b16 %v796
        %v1103 = vunpack.c.h.b16 %v796
        %v1104 = vunpack.c.l.b16 %v797
        %v1105 = vunpack.c.h.b16 %v797
        %v1106 = vunpack.c.l.b16 %v798
        %v1107 = vunpack.c.h.b16 %v798
        %v1108 = vunpack.c.l.b16 %v799
        %v1109 = vunpack.c.h.b16 %v799
        %v1110 = vunpack.c.l.b16 %v800
        %v1111 = vunpack.c.h.b16 %v800
        %v1112 = vunpack.c.l.b16 %v801
        %v1113 = vunpack.c.h.b16 %v801
        %v1114 = vunpack.c.l.b16 %v802
        %v1115 = vunpack.c.h.b16 %v802
        %v1116 = vunpack.c.l.b16 %v803
        %v1117 = vunpack.c.h.b16 %v803
        %v1118 = vunpack.c.l.b16 %v804
        %v1119 = vunpack.c.h.b16 %v804
        %v1120 = vunpack.c.l.b16 %v805
        %v1121 = vunpack.c.h.b16 %v805
        %v1122 = vunpack.c.l.b16 %v806
        %v1123 = vunpack.c.h.b16 %v806
        %v1124 = vunpack.c.l.b16 %v807
        %v1125 = vunpack.c.h.b16 %v807
        %v1126 = vunpack.c.l.b16 %v808
        %v1127 = vunpack.c.h.b16 %v808
        %v1128 = vunpack.c.l.b16 %v809
        %v1129 = vunpack.c.h.b16 %v809
        %v1130 = vpack.c.b16 %v1010, %v1002
        %v1131 = vpack.c.b16 %v1011, %v1003
        %v1132 = vpack.c.b16 %v1012, %v1004
        %v1133 = vpack.c.b16 %v1013, %v1005
        %v1134 = vpack.c.b16 %v1014, %v1006
        %v1135 = vpack.c.b16 %v1015, %v1007
        %v1136 = vpack.c.b16 %v1016, %v1008
        %v1137 = vpack.c.b16 %v1017, %v1009
        %v1138 = vpack.c.b16 %v1026, %v1018
        %v1139 = vpack.c.b16 %v1027, %v1019
        %v1140 = vpack.c.b16 %v1028, %v1020
        %v1141 = vpack.c.b16 %v1029, %v1021
        %v1142 = vpack.c.b16 %v1030, %v1022
        %v1143 = vpack.c.b16 %v1031, %v1023
        %v1144 = vpack.c.b16 %v1032, %v1024
        %v1145 = vpack.c.b16 %v1033, %v1025
        %v1146 = vpack.c.b16 %v1042, %v1034
        %v1147 = vpack.c.b16 %v1043, %v1035
        %v1148 = vpack.c.b16 %v1044, %v1036
        %v1149 = vpack.c.b16 %v1045, %v1037
        %v1150 = vpack.c.b16 %v1046, %v1038
        %v1151 = vpack.c.b16 %v1047, %v1039
        %v1152 = vpack.c.b16 %v1048, %v1040
        %v1153 = vpack.c.b16 %v1049, %v1041
        %v1154 = vpack.c.b16 %v1058, %v1050
        %v1155 = vpack.c.b16 %v1059, %v1051
        %v1156 = vpack.c.b16 %v1060, %v1052
        %v1157 = vpack.c.b16 %v1061, %v1053
        %v1158 = vpack.c.b16 %v1062, %v1054
        %v1159 = vpack.c.b16 %v1063, %v1055
        %v1160 = vpack.c.b16 %v1064, %v1056
        %v1161 = vpack.c.b16 %v1065, %v1057
        %v1162 = vpack.c.b16 %v1074, %v1066
        %v1163 = vpack.c.b16 %v1075, %v1067
        %v1164 = vpack.c.b16 %v1076, %v1068
        %v1165 = vpack.c.b16 %v1077, %v1069
        %v1166 = vpack.c.b16 %v1078, %v1070
        %v1167 = vpack.c.b16 %v1079, %v1071
        %v1168 = vpack.c.b16 %v1080, %v1072
        %v1169 = vpack.c.b16 %v1081, %v1073
        %v1170 = vpack.c.b16 %v1090, %v1082
        %v1171 = vpack.c.b16 %v1091, %v1083
        %v1172 = vpack.c.b16 %v1092, %v1084
        %v1173 = vpack.c.b16 %v1093, %v1085
        %v1174 = vpack.c.b16 %v1094, %v1086
        %v1175 = vpack.c.b16 %v1095, %v1087
        %v1176 = vpack.c.b16 %v1096, %v1088
        %v1177 = vpack.c.b16 %v1097, %v1089
        %v1178 = vpack.c.b16 %v1106, %v1098
        %v1179 = vpack.c.b16 %v1107, %v1099
        %v1180 = vpack.c.b16 %v1108, %v1100
        %v1181 = vpack.c.b16 %v1109, %v1101
        %v1182 = vpack.c.b16 %v1110, %v1102
        %v1183 = vpack.c.b16 %v1111, %v1103
        %v1184 = vpack.c.b16 %v1112, %v1104
        %v1185 = vpack.c.b16 %v1113, %v1105
        %v1186 = vpack.c.b16 %v1122, %v1114
        %v1187 = vpack.c.b16 %v1123, %v1115
        %v1188 = vpack.c.b16 %v1124, %v1116
        %v1189 = vpack.c.b16 %v1125, %v1117
        %v1190 = vpack.c.b16 %v1126, %v1118
        %v1191 = vpack.c.b16 %v1127, %v1119
        %v1192 = vpack.c.b16 %v1128, %v1120
        %v1193 = vpack.c.b16 %v1129, %v1121
        %1258 = vmatpush.bf16.msra.mxu0 %v1186
        %1259 = vmatpush.bf16.msra.mxu0 %v1178
        %1260 = vmatpush.bf16.msra.mxu0 %v1170
        %1261 = vmatpush.bf16.msra.mxu0 %v1162
        %1262 = vmatpush.bf16.msra.mxu0 %v1154
        %1263 = vmatpush.bf16.msra.mxu0 %v1146
        %1264 = vmatpush.bf16.msra.mxu0 %v1138
        %1265 = vmatpush.bf16.msra.mxu0 %v1130
        %1266 = vmatmul.bf16.gmra.mxu0 %v936
        %v1267 = vpop.f32.mrf.mxu0
        %v1268 = vadd.f32 %v812, %v1267
        %v1269 = vpop.f32.mrf.mxu0
        %v1270 = vadd.f32 %v812, %v1269
        %1271 = vdwg.mxu0
        %1272 = vmatpush.bf16.msra.mxu0 %v1187
        %1273 = vmatpush.bf16.msra.mxu0 %v1179
        %1274 = vmatpush.bf16.msra.mxu0 %v1171
        %1275 = vmatpush.bf16.msra.mxu0 %v1163
        %1276 = vmatpush.bf16.msra.mxu0 %v1155
        %1277 = vmatpush.bf16.msra.mxu0 %v1147
        %1278 = vmatpush.bf16.msra.mxu0 %v1139
        %1279 = vmatpush.bf16.msra.mxu0 %v1131
        %1280 = vmatmul.bf16.gmra.mxu0 %v936
        %v1281 = vpop.f32.mrf.mxu0
        %v1282 = vadd.f32 %v813, %v1281
        %v1283 = vpop.f32.mrf.mxu0
        %v1284 = vadd.f32 %v813, %v1283
        %1285 = vdwg.mxu0
        %1286 = vmatpush.bf16.msra.mxu0 %v1188
        %1287 = vmatpush.bf16.msra.mxu0 %v1180
        %1288 = vmatpush.bf16.msra.mxu0 %v1172
        %1289 = vmatpush.bf16.msra.mxu0 %v1164
        %1290 = vmatpush.bf16.msra.mxu0 %v1156
        %1291 = vmatpush.bf16.msra.mxu0 %v1148
        %1292 = vmatpush.bf16.msra.mxu0 %v1140
        %1293 = vmatpush.bf16.msra.mxu0 %v1132
        %1294 = vmatmul.bf16.gmra.mxu0 %v936
        %v1295 = vpop.f32.mrf.mxu0
        %v1296 = vadd.f32 %v814, %v1295
        %v1297 = vpop.f32.mrf.mxu0
        %v1298 = vadd.f32 %v814, %v1297
        %1299 = vdwg.mxu0
        %1300 = vmatpush.bf16.msra.mxu0 %v1189
        %1301 = vmatpush.bf16.msra.mxu0 %v1181
        %1302 = vmatpush.bf16.msra.mxu0 %v1173
        %1303 = vmatpush.bf16.msra.mxu0 %v1165
        %1304 = vmatpush.bf16.msra.mxu0 %v1157
        %1305 = vmatpush.bf16.msra.mxu0 %v1149
        %1306 = vmatpush.bf16.msra.mxu0 %v1141
        %1307 = vmatpush.bf16.msra.mxu0 %v1133
        %1308 = vmatmul.bf16.gmra.mxu0 %v936
        %v1309 = vpop.f32.mrf.mxu0
        %v1310 = vadd.f32 %v815, %v1309
        %v1311 = vpop.f32.mrf.mxu0
        %v1312 = vadd.f32 %v815, %v1311
        %1313 = vdwg.mxu0
        %1314 = vmatpush.bf16.msra.mxu0 %v1190
        %1315 = vmatpush.bf16.msra.mxu0 %v1182
        %1316 = vmatpush.bf16.msra.mxu0 %v1174
        %1317 = vmatpush.bf16.msra.mxu0 %v1166
        %1318 = vmatpush.bf16.msra.mxu0 %v1158
        %1319 = vmatpush.bf16.msra.mxu0 %v1150
        %1320 = vmatpush.bf16.msra.mxu0 %v1142
        %1321 = vmatpush.bf16.msra.mxu0 %v1134
        %1322 = vmatmul.bf16.gmra.mxu0 %v936
        %v1323 = vpop.f32.mrf.mxu0
        %v1324 = vadd.f32 %v816, %v1323
        %v1325 = vpop.f32.mrf.mxu0
        %v1326 = vadd.f32 %v816, %v1325
        %1327 = vdwg.mxu0
        %1328 = vmatpush.bf16.msra.mxu0 %v1191
        %1329 = vmatpush.bf16.msra.mxu0 %v1183
        %1330 = vmatpush.bf16.msra.mxu0 %v1175
        %1331 = vmatpush.bf16.msra.mxu0 %v1167
        %1332 = vmatpush.bf16.msra.mxu0 %v1159
        %1333 = vmatpush.bf16.msra.mxu0 %v1151
        %1334 = vmatpush.bf16.msra.mxu0 %v1143
        %1335 = vmatpush.bf16.msra.mxu0 %v1135
        %1336 = vmatmul.bf16.gmra.mxu0 %v936
        %v1337 = vpop.f32.mrf.mxu0
        %v1338 = vadd.f32 %v817, %v1337
        %v1339 = vpop.f32.mrf.mxu0
        %v1340 = vadd.f32 %v817, %v1339
        %1341 = vdwg.mxu0
        %1342 = vmatpush.bf16.msra.mxu0 %v1192
        %1343 = vmatpush.bf16.msra.mxu0 %v1184
        %1344 = vmatpush.bf16.msra.mxu0 %v1176
        %1345 = vmatpush.bf16.msra.mxu0 %v1168
        %1346 = vmatpush.bf16.msra.mxu0 %v1160
        %1347 = vmatpush.bf16.msra.mxu0 %v1152
        %1348 = vmatpush.bf16.msra.mxu0 %v1144
        %1349 = vmatpush.bf16.msra.mxu0 %v1136
        %1350 = vmatmul.bf16.gmra.mxu0 %v936
        %v1351 = vpop.f32.mrf.mxu0
        %v1352 = vadd.f32 %v818, %v1351
        %v1353 = vpop.f32.mrf.mxu0
        %v1354 = vadd.f32 %v818, %v1353
        %1355 = vdwg.mxu0
        %1356 = vmatpush.bf16.msra.mxu0 %v1193
        %1357 = vmatpush.bf16.msra.mxu0 %v1185
        %1358 = vmatpush.bf16.msra.mxu0 %v1177
        %1359 = vmatpush.bf16.msra.mxu0 %v1169
        %1360 = vmatpush.bf16.msra.mxu0 %v1161
        %1361 = vmatpush.bf16.msra.mxu0 %v1153
        %1362 = vmatpush.bf16.msra.mxu0 %v1145
        %1363 = vmatpush.bf16.msra.mxu0 %v1137
        %1364 = vmatmul.bf16.gmra.mxu0 %v936
        %v1365 = vpop.f32.mrf.mxu0
        %v1366 = vadd.f32 %v819, %v1365
        %v1367 = vpop.f32.mrf.mxu0
        %v1368 = vadd.f32 %v819, %v1367
        %1369 = vdwg.mxu0
        %v1370 = vmax.f32 %v1268, 0.0
        %v1371 = vmax.f32 %v1282, 0.0
        %v1372 = vmax.f32 %v1296, 0.0
        %v1373 = vmax.f32 %v1310, 0.0
        %v1374 = vmax.f32 %v1324, 0.0
        %v1375 = vmax.f32 %v1338, 0.0
        %v1376 = vmax.f32 %v1352, 0.0
        %v1377 = vmax.f32 %v1366, 0.0
        %v1378 = vmax.f32 %v1270, 0.0
        %v1379 = vmax.f32 %v1284, 0.0
        %v1380 = vmax.f32 %v1298, 0.0
        %v1381 = vmax.f32 %v1312, 0.0
        %v1382 = vmax.f32 %v1326, 0.0
        %v1383 = vmax.f32 %v1340, 0.0
        %v1384 = vmax.f32 %v1354, 0.0
        %v1385 = vmax.f32 %v1368, 0.0
        %v1386 = vadd.f32 %v1370, %v1378
        %v1387 = vrot.slane %v1386, 4
        %v1388 = vadd.f32 %v1386, %v1387
        %v1389 = vrot.slane %v1388, 2
        %v1390 = vadd.f32 %v1388, %v1389
        %v1391 = vrot.slane %v1390, 1
        %v1392 = vadd.f32 %v1390, %v1391
        %v1393 = vadd.f32 %v1371, %v1379
        %v1394 = vrot.slane %v1393, 4
        %v1395 = vadd.f32 %v1393, %v1394
        %v1396 = vrot.slane %v1395, 2
        %v1397 = vadd.f32 %v1395, %v1396
        %v1398 = vrot.slane %v1397, 1
        %v1399 = vadd.f32 %v1397, %v1398
        %v1400 = vadd.f32 %v1372, %v1380
        %v1401 = vrot.slane %v1400, 4
        %v1402 = vadd.f32 %v1400, %v1401
        %v1403 = vrot.slane %v1402, 2
        %v1404 = vadd.f32 %v1402, %v1403
        %v1405 = vrot.slane %v1404, 1
        %v1406 = vadd.f32 %v1404, %v1405
        %v1407 = vadd.f32 %v1373, %v1381
        %v1408 = vrot.slane %v1407, 4
        %v1409 = vadd.f32 %v1407, %v1408
        %v1410 = vrot.slane %v1409, 2
        %v1411 = vadd.f32 %v1409, %v1410
        %v1412 = vrot.slane %v1411, 1
        %v1413 = vadd.f32 %v1411, %v1412
        %v1414 = vadd.f32 %v1374, %v1382
        %v1415 = vrot.slane %v1414, 4
        %v1416 = vadd.f32 %v1414, %v1415
        %v1417 = vrot.slane %v1416, 2
        %v1418 = vadd.f32 %v1416, %v1417
        %v1419 = vrot.slane %v1418, 1
        %v1420 = vadd.f32 %v1418, %v1419
        %v1421 = vadd.f32 %v1375, %v1383
        %v1422 = vrot.slane %v1421, 4
        %v1423 = vadd.f32 %v1421, %v1422
        %v1424 = vrot.slane %v1423, 2
        %v1425 = vadd.f32 %v1423, %v1424
        %v1426 = vrot.slane %v1425, 1
        %v1427 = vadd.f32 %v1425, %v1426
        %v1428 = vadd.f32 %v1376, %v1384
        %v1429 = vrot.slane %v1428, 4
        %v1430 = vadd.f32 %v1428, %v1429
        %v1431 = vrot.slane %v1430, 2
        %v1432 = vadd.f32 %v1430, %v1431
        %v1433 = vrot.slane %v1432, 1
        %v1434 = vadd.f32 %v1432, %v1433
        %v1435 = vadd.f32 %v1377, %v1385
        %v1436 = vrot.slane %v1435, 4
        %v1437 = vadd.f32 %v1435, %v1436
        %v1438 = vrot.slane %v1437, 2
        %v1439 = vadd.f32 %v1437, %v1438
        %v1440 = vrot.slane %v1439, 1
        %v1441 = vadd.f32 %v1439, %v1440
        %v1442 = vmul.f32 %v1392, 0.0625
        %v1443 = vmul.f32 %v1399, 0.0625
        %v1444 = vmul.f32 %v1406, 0.0625
        %v1445 = vmul.f32 %v1413, 0.0625
        %v1446 = vmul.f32 %v1420, 0.0625
        %v1447 = vmul.f32 %v1427, 0.0625
        %v1448 = vmul.f32 %v1434, 0.0625
        %v1449 = vmul.f32 %v1441, 0.0625
        %v1450 = vld [vmem:[%s440] sm:$0x1]
        %v1451 = vld [vmem:[%s437] sm:$0xff]
        %v1452 = vld [vmem:[%s437 + $0x8] sm:$0xff]
        %v1453 = vld [vmem:[%s437 + $0x10] sm:$0xff]
        %v1457 = vunpack.c.l.b16 %v1451
        %v1458 = vunpack.c.h.b16 %v1451
        %v1459 = vunpack.c.l.b16 %v1452
        %v1460 = vunpack.c.h.b16 %v1452
        %v1461 = vunpack.c.l.b16 %v1453
        %v1462 = vunpack.c.h.b16 %v1453
        %v1463 = vpack.c.b16 %v1457, %v1457
        %v1464 = vpack.c.b16 %v1458, %v1458
        %v1465 = vpack.c.b16 %v1459, %v1459
        %v1466 = vpack.c.b16 %v1460, %v1460
        %v1467 = vpack.c.b16 %v1461, %v1461
        %v1468 = vpack.c.b16 %v1462, %v1462
        %vm1469 = vcmask 64512
        %v1471 = vsel %vm1469, %v1450, 0
        %vm1473 = vcmask 1043456
        %v1475 = vsel %vm1473, %v1463, 0
        %v1478 = vsel %vm1473, %v1464, 0
        %v1481 = vsel %vm1473, %v1465, 0
        %v1484 = vsel %vm1473, %v1466, 0
        %v1487 = vsel %vm1473, %v1467, 0
        %v1490 = vsel %vm1473, %v1468, 0
        %1492 = vmatpush.bf16.msra.mxu0 0
        %1493 = vmatpush.bf16.msra.mxu0 0
        %1494 = vmatpush.bf16.msra.mxu0 0
        %1495 = vmatpush.bf16.msra.mxu0 0
        %1496 = vmatpush.bf16.msra.mxu0 0
        %1497 = vmatpush.bf16.msra.mxu0 0
        %1498 = vmatpush.bf16.msra.mxu0 0
        %1499 = vmatpush.bf16.msra.mxu0 %v1475
        %1500 = vmatmul.bf16.gmra.mxu0 %v1471
        %v1501 = vpop.f32.mrf.mxu0
        %v1502 = vadd.f32 0.0, %v1501
        %v1503 = vpop.f32.mrf.mxu0
        %1504 = vdwg.mxu0
        %1505 = vmatpush.bf16.msra.mxu0 0
        %1506 = vmatpush.bf16.msra.mxu0 0
        %1507 = vmatpush.bf16.msra.mxu0 0
        %1508 = vmatpush.bf16.msra.mxu0 0
        %1509 = vmatpush.bf16.msra.mxu0 0
        %1510 = vmatpush.bf16.msra.mxu0 0
        %1511 = vmatpush.bf16.msra.mxu0 0
        %1512 = vmatpush.bf16.msra.mxu0 %v1478
        %1513 = vmatmul.bf16.gmra.mxu0 %v1471
        %v1514 = vpop.f32.mrf.mxu0
        %v1515 = vadd.f32 0.0, %v1514
        %v1516 = vpop.f32.mrf.mxu0
        %1517 = vdwg.mxu0
        %1518 = vmatpush.bf16.msra.mxu0 0
        %1519 = vmatpush.bf16.msra.mxu0 0
        %1520 = vmatpush.bf16.msra.mxu0 0
        %1521 = vmatpush.bf16.msra.mxu0 0
        %1522 = vmatpush.bf16.msra.mxu0 0
        %1523 = vmatpush.bf16.msra.mxu0 0
        %1524 = vmatpush.bf16.msra.mxu0 0
        %1525 = vmatpush.bf16.msra.mxu0 %v1481
        %1526 = vmatmul.bf16.gmra.mxu0 %v1471
        %v1527 = vpop.f32.mrf.mxu0
        %v1528 = vadd.f32 0.0, %v1527
        %v1529 = vpop.f32.mrf.mxu0
        %1530 = vdwg.mxu0
        %1531 = vmatpush.bf16.msra.mxu0 0
        %1532 = vmatpush.bf16.msra.mxu0 0
        %1533 = vmatpush.bf16.msra.mxu0 0
        %1534 = vmatpush.bf16.msra.mxu0 0
        %1535 = vmatpush.bf16.msra.mxu0 0
        %1536 = vmatpush.bf16.msra.mxu0 0
        %1537 = vmatpush.bf16.msra.mxu0 0
        %1538 = vmatpush.bf16.msra.mxu0 %v1484
        %1539 = vmatmul.bf16.gmra.mxu0 %v1471
        %v1540 = vpop.f32.mrf.mxu0
        %v1541 = vadd.f32 0.0, %v1540
        %v1542 = vpop.f32.mrf.mxu0
        %1543 = vdwg.mxu0
        %1544 = vmatpush.bf16.msra.mxu0 0
        %1545 = vmatpush.bf16.msra.mxu0 0
        %1546 = vmatpush.bf16.msra.mxu0 0
        %1547 = vmatpush.bf16.msra.mxu0 0
        %1548 = vmatpush.bf16.msra.mxu0 0
        %1549 = vmatpush.bf16.msra.mxu0 0
        %1550 = vmatpush.bf16.msra.mxu0 0
        %1551 = vmatpush.bf16.msra.mxu0 %v1487
        %1552 = vmatmul.bf16.gmra.mxu0 %v1471
        %v1553 = vpop.f32.mrf.mxu0
        %v1554 = vadd.f32 0.0, %v1553
        %v1555 = vpop.f32.mrf.mxu0
        %1556 = vdwg.mxu0
        %1557 = vmatpush.bf16.msra.mxu0 0
        %1558 = vmatpush.bf16.msra.mxu0 0
        %1559 = vmatpush.bf16.msra.mxu0 0
        %1560 = vmatpush.bf16.msra.mxu0 0
        %1561 = vmatpush.bf16.msra.mxu0 0
        %1562 = vmatpush.bf16.msra.mxu0 0
        %1563 = vmatpush.bf16.msra.mxu0 0
        %1564 = vmatpush.bf16.msra.mxu0 %v1490
        %1565 = vmatmul.bf16.gmra.mxu0 %v1471
        %v1566 = vpop.f32.mrf.mxu0
        %v1567 = vadd.f32 0.0, %v1566
        %v1568 = vpop.f32.mrf.mxu0
        %1569 = vdwg.mxu0
        %v1570 = vpack.c.bf16 %v1502, %v1502
        %v1571 = vpack.c.bf16 %v1515, %v1515
        %v1572 = vpack.c.bf16 %v1528, %v1528
        %v1573 = vpack.c.bf16 %v1541, %v1541
        %v1574 = vpack.c.bf16 %v1554, %v1554
        %v1575 = vpack.c.bf16 %v1567, %v1567
        %v1576 = vld [vmem:[#allocation5] sm:$0xf]
        %v1577 = vld [vmem:[#allocation5 + $0x4] sm:$0xf]
        %v1578 = vld [vmem:[#allocation5 + $0x8] sm:$0xf]
        %v1579 = vld [vmem:[#allocation5 + $0xc] sm:$0xf]
        %v1580 = vld [vmem:[#allocation5 + $0x10] sm:$0xf]
        %v1581 = vld [vmem:[#allocation5 + $0x14] sm:$0xf]
        %v1582 = vld [vmem:[#allocation5 + $0x18] sm:$0xf]
        %v1583 = vld [vmem:[#allocation5 + $0x1c] sm:$0xf]
        %v1584 = vld [vmem:[#allocation5 + $0x20] sm:$0xf]
        %v1585 = vld [vmem:[#allocation5 + $0x24] sm:$0xf]
        %v1586 = vld [vmem:[#allocation5 + $0x28] sm:$0xf]
        %v1587 = vld [vmem:[#allocation5 + $0x2c] sm:$0xf]
        %v1588 = vld [vmem:[#allocation5 + $0x30] sm:$0xf]
        %v1589 = vld [vmem:[#allocation5 + $0x34] sm:$0xf]
        %v1590 = vld [vmem:[#allocation5 + $0x38] sm:$0xf]
        %v1591 = vld [vmem:[#allocation5 + $0x3c] sm:$0xf]
        %v1592 = vld [vmem:[#allocation5 + $0x40] sm:$0xf]
        %v1593 = vld [vmem:[#allocation5 + $0x44] sm:$0xf]
        %v1594 = vld [vmem:[#allocation5 + $0x48] sm:$0xf]
        %v1595 = vld [vmem:[#allocation5 + $0x4c] sm:$0xf]
        %v1596 = vld [vmem:[#allocation5 + $0x50] sm:$0xf]
        %v1597 = vld [vmem:[#allocation5 + $0x54] sm:$0xf]
        %v1598 = vld [vmem:[#allocation5 + $0x58] sm:$0xf]
        %v1599 = vld [vmem:[#allocation5 + $0x5c] sm:$0xf]
        %v1600 = vld [vmem:[#allocation5 + $0x60] sm:$0xf]
        %v1601 = vld [vmem:[#allocation5 + $0x64] sm:$0xf]
        %v1602 = vld [vmem:[#allocation5 + $0x68] sm:$0xf]
        %v1603 = vld [vmem:[#allocation5 + $0x6c] sm:$0xf]
        %v1604 = vld [vmem:[#allocation5 + $0x70] sm:$0xf]
        %v1605 = vld [vmem:[#allocation5 + $0x74] sm:$0xf]
        %v1606 = vld [vmem:[#allocation5 + $0x78] sm:$0xf]
        %v1607 = vld [vmem:[#allocation5 + $0x7c] sm:$0xf]
        %v1608 = vld [vmem:[#allocation5 + $0x80] sm:$0xf]
        %v1609 = vld [vmem:[#allocation5 + $0x84] sm:$0xf]
        %v1610 = vld [vmem:[#allocation5 + $0x88] sm:$0xf]
        %v1611 = vld [vmem:[#allocation5 + $0x8c] sm:$0xf]
        %v1612 = vld [vmem:[#allocation5 + $0x90] sm:$0xf]
        %v1613 = vld [vmem:[#allocation5 + $0x94] sm:$0xf]
        %v1614 = vld [vmem:[#allocation5 + $0x98] sm:$0xf]
        %v1615 = vld [vmem:[#allocation5 + $0x9c] sm:$0xf]
        %v1616 = vld [vmem:[#allocation5 + $0xa0] sm:$0xf]
        %v1617 = vld [vmem:[#allocation5 + $0xa4] sm:$0xf]
        %v1618 = vld [vmem:[#allocation5 + $0xa8] sm:$0xf]
        %v1619 = vld [vmem:[#allocation5 + $0xac] sm:$0xf]
        %v1620 = vld [vmem:[#allocation5 + $0xb0] sm:$0xf]
        %v1621 = vld [vmem:[#allocation5 + $0xb4] sm:$0xf]
        %v1622 = vld [vmem:[#allocation5 + $0xb8] sm:$0xf]
        %v1623 = vld [vmem:[#allocation5 + $0xbc] sm:$0xf]
        %v1624 = vld [vmem:[#allocation5 + $0xc0] sm:$0xf]
        %v1625 = vld [vmem:[#allocation5 + $0xc4] sm:$0xf]
        %v1626 = vld [vmem:[#allocation5 + $0xc8] sm:$0xf]
        %v1627 = vld [vmem:[#allocation5 + $0xcc] sm:$0xf]
        %v1628 = vld [vmem:[#allocation5 + $0xd0] sm:$0xf]
        %v1629 = vld [vmem:[#allocation5 + $0xd4] sm:$0xf]
        %v1630 = vld [vmem:[#allocation5 + $0xd8] sm:$0xf]
        %v1631 = vld [vmem:[#allocation5 + $0xdc] sm:$0xf]
        %v1632 = vld [vmem:[#allocation5 + $0xe0] sm:$0xf]
        %v1633 = vld [vmem:[#allocation5 + $0xe4] sm:$0xf]
        %v1634 = vld [vmem:[#allocation5 + $0xe8] sm:$0xf]
        %v1635 = vld [vmem:[#allocation5 + $0xec] sm:$0xf]
        %v1636 = vld [vmem:[#allocation5 + $0xf0] sm:$0xf]
        %v1637 = vld [vmem:[#allocation5 + $0xf4] sm:$0xf]
        %v1638 = vld [vmem:[#allocation5 + $0xf8] sm:$0xf]
        %v1639 = vld [vmem:[#allocation5 + $0xfc] sm:$0xf]
        %v1640 = vld [vmem:[#allocation5 + $0x100] sm:$0xf]
        %v1641 = vld [vmem:[#allocation5 + $0x104] sm:$0xf]
        %v1642 = vld [vmem:[#allocation5 + $0x108] sm:$0xf]
        %v1643 = vld [vmem:[#allocation5 + $0x10c] sm:$0xf]
        %v1644 = vld [vmem:[#allocation5 + $0x110] sm:$0xf]
        %v1645 = vld [vmem:[#allocation5 + $0x114] sm:$0xf]
        %v1646 = vld [vmem:[#allocation5 + $0x118] sm:$0xf]
        %v1647 = vld [vmem:[#allocation5 + $0x11c] sm:$0xf]
        %v1648 = vld [vmem:[#allocation5 + $0x120] sm:$0xf]
        %v1649 = vld [vmem:[#allocation5 + $0x124] sm:$0xf]
        %v1650 = vld [vmem:[#allocation5 + $0x128] sm:$0xf]
        %v1651 = vld [vmem:[#allocation5 + $0x12c] sm:$0xf]
        %v1652 = vld [vmem:[#allocation5 + $0x130] sm:$0xf]
        %v1653 = vld [vmem:[#allocation5 + $0x134] sm:$0xf]
        %v1654 = vld [vmem:[#allocation5 + $0x138] sm:$0xf]
        %v1655 = vld [vmem:[#allocation5 + $0x13c] sm:$0xf]
        %v1656 = vld [vmem:[#allocation5 + $0x140] sm:$0xf]
        %v1657 = vld [vmem:[#allocation5 + $0x144] sm:$0xf]
        %v1658 = vld [vmem:[#allocation5 + $0x148] sm:$0xf]
        %v1659 = vld [vmem:[#allocation5 + $0x14c] sm:$0xf]
        %v1660 = vld [vmem:[#allocation5 + $0x150] sm:$0xf]
        %v1661 = vld [vmem:[#allocation5 + $0x154] sm:$0xf]
        %v1662 = vld [vmem:[#allocation5 + $0x158] sm:$0xf]
        %v1663 = vld [vmem:[#allocation5 + $0x15c] sm:$0xf]
        %v1664 = vld [vmem:[#allocation5 + $0x160] sm:$0xf]
        %v1665 = vld [vmem:[#allocation5 + $0x164] sm:$0xf]
        %v1666 = vld [vmem:[#allocation5 + $0x168] sm:$0xf]
        %v1667 = vld [vmem:[#allocation5 + $0x16c] sm:$0xf]
        %v1668 = vld [vmem:[#allocation5 + $0x170] sm:$0xf]
        %v1669 = vld [vmem:[#allocation5 + $0x174] sm:$0xf]
        %v1670 = vld [vmem:[#allocation5 + $0x178] sm:$0xf]
        %v1671 = vld [vmem:[#allocation5 + $0x17c] sm:$0xf]
        %v1672 = vpack.c.bf16 %v1442, %v1442
        %v1673 = vpack.c.bf16 %v1443, %v1443
        %v1674 = vpack.c.bf16 %v1444, %v1444
        %v1675 = vpack.c.bf16 %v1445, %v1445
        %v1676 = vpack.c.bf16 %v1446, %v1446
        %v1677 = vpack.c.bf16 %v1447, %v1447
        %v1678 = vpack.c.bf16 %v1448, %v1448
        %v1679 = vpack.c.bf16 %v1449, %v1449
        %v1680 = vld [vmem:[#allocation7] sm:$0xf]
        %v1681 = vld [vmem:[#allocation7 + $0x4] sm:$0xf]
        %v1682 = vld [vmem:[#allocation7 + $0x8] sm:$0xf]
        %v1683 = vld [vmem:[#allocation7 + $0xc] sm:$0xf]
        %v1684 = vld [vmem:[#allocation7 + $0x10] sm:$0xf]
        %v1685 = vld [vmem:[#allocation7 + $0x14] sm:$0xf]
        %v1686 = vld [vmem:[#allocation7 + $0x18] sm:$0xf]
        %v1687 = vld [vmem:[#allocation7 + $0x1c] sm:$0xf]
        %v1688 = vld [vmem:[#allocation7 + $0x20] sm:$0xf]
        %v1689 = vld [vmem:[#allocation7 + $0x24] sm:$0xf]
        %v1690 = vld [vmem:[#allocation7 + $0x28] sm:$0xf]
        %v1691 = vld [vmem:[#allocation7 + $0x2c] sm:$0xf]
        %v1692 = vld [vmem:[#allocation7 + $0x30] sm:$0xf]
        %v1693 = vld [vmem:[#allocation7 + $0x34] sm:$0xf]
        %v1694 = vld [vmem:[#allocation7 + $0x38] sm:$0xf]
        %v1695 = vld [vmem:[#allocation7 + $0x3c] sm:$0xf]
        %v1696 = vld [vmem:[#allocation7 + $0x40] sm:$0xf]
        %v1697 = vld [vmem:[#allocation7 + $0x44] sm:$0xf]
        %v1698 = vld [vmem:[#allocation7 + $0x48] sm:$0xf]
        %v1699 = vld [vmem:[#allocation7 + $0x4c] sm:$0xf]
        %v1700 = vld [vmem:[#allocation7 + $0x50] sm:$0xf]
        %v1701 = vld [vmem:[#allocation7 + $0x54] sm:$0xf]
        %v1702 = vld [vmem:[#allocation7 + $0x58] sm:$0xf]
        %v1703 = vld [vmem:[#allocation7 + $0x5c] sm:$0xf]
        %v1704 = vld [vmem:[#allocation7 + $0x60] sm:$0xf]
        %v1705 = vld [vmem:[#allocation7 + $0x64] sm:$0xf]
        %v1706 = vld [vmem:[#allocation7 + $0x68] sm:$0xf]
        %v1707 = vld [vmem:[#allocation7 + $0x6c] sm:$0xf]
        %v1708 = vld [vmem:[#allocation7 + $0x70] sm:$0xf]
        %v1709 = vld [vmem:[#allocation7 + $0x74] sm:$0xf]
        %v1710 = vld [vmem:[#allocation7 + $0x78] sm:$0xf]
        %v1711 = vld [vmem:[#allocation7 + $0x7c] sm:$0xf]
        %v1712 = vld [vmem:[#allocation7 + $0x80] sm:$0xf]
        %v1713 = vld [vmem:[#allocation7 + $0x84] sm:$0xf]
        %v1714 = vld [vmem:[#allocation7 + $0x88] sm:$0xf]
        %v1715 = vld [vmem:[#allocation7 + $0x8c] sm:$0xf]
        %v1716 = vld [vmem:[#allocation7 + $0x90] sm:$0xf]
        %v1717 = vld [vmem:[#allocation7 + $0x94] sm:$0xf]
        %v1718 = vld [vmem:[#allocation7 + $0x98] sm:$0xf]
        %v1719 = vld [vmem:[#allocation7 + $0x9c] sm:$0xf]
        %v1720 = vld [vmem:[#allocation7 + $0xa0] sm:$0xf]
        %v1721 = vld [vmem:[#allocation7 + $0xa4] sm:$0xf]
        %v1722 = vld [vmem:[#allocation7 + $0xa8] sm:$0xf]
        %v1723 = vld [vmem:[#allocation7 + $0xac] sm:$0xf]
        %v1724 = vld [vmem:[#allocation7 + $0xb0] sm:$0xf]
        %v1725 = vld [vmem:[#allocation7 + $0xb4] sm:$0xf]
        %v1726 = vld [vmem:[#allocation7 + $0xb8] sm:$0xf]
        %v1727 = vld [vmem:[#allocation7 + $0xbc] sm:$0xf]
        %v1728 = vld [vmem:[#allocation7 + $0xc0] sm:$0xf]
        %v1729 = vld [vmem:[#allocation7 + $0xc4] sm:$0xf]
        %v1730 = vld [vmem:[#allocation7 + $0xc8] sm:$0xf]
        %v1731 = vld [vmem:[#allocation7 + $0xcc] sm:$0xf]
        %v1732 = vld [vmem:[#allocation7 + $0xd0] sm:$0xf]
        %v1733 = vld [vmem:[#allocation7 + $0xd4] sm:$0xf]
        %v1734 = vld [vmem:[#allocation7 + $0xd8] sm:$0xf]
        %v1735 = vld [vmem:[#allocation7 + $0xdc] sm:$0xf]
        %v1736 = vld [vmem:[#allocation7 + $0xe0] sm:$0xf]
        %v1737 = vld [vmem:[#allocation7 + $0xe4] sm:$0xf]
        %v1738 = vld [vmem:[#allocation7 + $0xe8] sm:$0xf]
        %v1739 = vld [vmem:[#allocation7 + $0xec] sm:$0xf]
        %v1740 = vld [vmem:[#allocation7 + $0xf0] sm:$0xf]
        %v1741 = vld [vmem:[#allocation7 + $0xf4] sm:$0xf]
        %v1742 = vld [vmem:[#allocation7 + $0xf8] sm:$0xf]
        %v1743 = vld [vmem:[#allocation7 + $0xfc] sm:$0xf]
        %v1744 = vld [vmem:[#allocation7 + $0x100] sm:$0xf]
        %v1745 = vld [vmem:[#allocation7 + $0x104] sm:$0xf]
        %v1746 = vld [vmem:[#allocation7 + $0x108] sm:$0xf]
        %v1747 = vld [vmem:[#allocation7 + $0x10c] sm:$0xf]
        %v1748 = vld [vmem:[#allocation7 + $0x110] sm:$0xf]
        %v1749 = vld [vmem:[#allocation7 + $0x114] sm:$0xf]
        %v1750 = vld [vmem:[#allocation7 + $0x118] sm:$0xf]
        %v1751 = vld [vmem:[#allocation7 + $0x11c] sm:$0xf]
        %v1752 = vld [vmem:[#allocation7 + $0x120] sm:$0xf]
        %v1753 = vld [vmem:[#allocation7 + $0x124] sm:$0xf]
        %v1754 = vld [vmem:[#allocation7 + $0x128] sm:$0xf]
        %v1755 = vld [vmem:[#allocation7 + $0x12c] sm:$0xf]
        %v1756 = vld [vmem:[#allocation7 + $0x130] sm:$0xf]
        %v1757 = vld [vmem:[#allocation7 + $0x134] sm:$0xf]
        %v1758 = vld [vmem:[#allocation7 + $0x138] sm:$0xf]
        %v1759 = vld [vmem:[#allocation7 + $0x13c] sm:$0xf]
        %v1760 = vld [vmem:[#allocation7 + $0x140] sm:$0xf]
        %v1761 = vld [vmem:[#allocation7 + $0x144] sm:$0xf]
        %v1762 = vld [vmem:[#allocation7 + $0x148] sm:$0xf]
        %v1763 = vld [vmem:[#allocation7 + $0x14c] sm:$0xf]
        %v1764 = vld [vmem:[#allocation7 + $0x150] sm:$0xf]
        %v1765 = vld [vmem:[#allocation7 + $0x154] sm:$0xf]
        %v1766 = vld [vmem:[#allocation7 + $0x158] sm:$0xf]
        %v1767 = vld [vmem:[#allocation7 + $0x15c] sm:$0xf]
        %v1768 = vld [vmem:[#allocation7 + $0x160] sm:$0xf]
        %v1769 = vld [vmem:[#allocation7 + $0x164] sm:$0xf]
        %v1770 = vld [vmem:[#allocation7 + $0x168] sm:$0xf]
        %v1771 = vld [vmem:[#allocation7 + $0x16c] sm:$0xf]
        %v1772 = vld [vmem:[#allocation7 + $0x170] sm:$0xf]
        %v1773 = vld [vmem:[#allocation7 + $0x174] sm:$0xf]
        %v1774 = vld [vmem:[#allocation7 + $0x178] sm:$0xf]
        %v1775 = vld [vmem:[#allocation7 + $0x17c] sm:$0xf]
        %v1776 = vld [vmem:[#allocation7 + $0x180] sm:$0xf]
        %v1777 = vld [vmem:[#allocation7 + $0x184] sm:$0xf]
        %v1778 = vld [vmem:[#allocation7 + $0x188] sm:$0xf]
        %v1779 = vld [vmem:[#allocation7 + $0x18c] sm:$0xf]
        %v1780 = vld [vmem:[#allocation7 + $0x190] sm:$0xf]
        %v1781 = vld [vmem:[#allocation7 + $0x194] sm:$0xf]
        %v1782 = vld [vmem:[#allocation7 + $0x198] sm:$0xf]
        %v1783 = vld [vmem:[#allocation7 + $0x19c] sm:$0xf]
        %v1784 = vld [vmem:[#allocation7 + $0x1a0] sm:$0xf]
        %v1785 = vld [vmem:[#allocation7 + $0x1a4] sm:$0xf]
        %v1786 = vld [vmem:[#allocation7 + $0x1a8] sm:$0xf]
        %v1787 = vld [vmem:[#allocation7 + $0x1ac] sm:$0xf]
        %v1788 = vld [vmem:[#allocation7 + $0x1b0] sm:$0xf]
        %v1789 = vld [vmem:[#allocation7 + $0x1b4] sm:$0xf]
        %v1790 = vld [vmem:[#allocation7 + $0x1b8] sm:$0xf]
        %v1791 = vld [vmem:[#allocation7 + $0x1bc] sm:$0xf]
        %v1792 = vld [vmem:[#allocation7 + $0x1c0] sm:$0xf]
        %v1793 = vld [vmem:[#allocation7 + $0x1c4] sm:$0xf]
        %v1794 = vld [vmem:[#allocation7 + $0x1c8] sm:$0xf]
        %v1795 = vld [vmem:[#allocation7 + $0x1cc] sm:$0xf]
        %v1796 = vld [vmem:[#allocation7 + $0x1d0] sm:$0xf]
        %v1797 = vld [vmem:[#allocation7 + $0x1d4] sm:$0xf]
        %v1798 = vld [vmem:[#allocation7 + $0x1d8] sm:$0xf]
        %v1799 = vld [vmem:[#allocation7 + $0x1dc] sm:$0xf]
        %v1800 = vld [vmem:[#allocation7 + $0x1e0] sm:$0xf]
        %v1801 = vld [vmem:[#allocation7 + $0x1e4] sm:$0xf]
        %v1802 = vld [vmem:[#allocation7 + $0x1e8] sm:$0xf]
        %v1803 = vld [vmem:[#allocation7 + $0x1ec] sm:$0xf]
        %v1804 = vld [vmem:[#allocation7 + $0x1f0] sm:$0xf]
        %v1805 = vld [vmem:[#allocation7 + $0x1f4] sm:$0xf]
        %v1806 = vld [vmem:[#allocation7 + $0x1f8] sm:$0xf]
        %v1807 = vld [vmem:[#allocation7 + $0x1fc] sm:$0xf]
        %v1936 = vunpack.c.l.b16 %v1680
        %v1937 = vunpack.c.l.b16 %v1681
        %v1938 = vunpack.c.l.b16 %v1682
        %v1939 = vunpack.c.l.b16 %v1683
        %v1940 = vunpack.c.l.b16 %v1684
        %v1941 = vunpack.c.l.b16 %v1685
        %v1942 = vunpack.c.l.b16 %v1686
        %v1943 = vunpack.c.l.b16 %v1687
        %v1944 = vunpack.c.l.b16 %v1688
        %v1945 = vunpack.c.l.b16 %v1689
        %v1946 = vunpack.c.l.b16 %v1690
        %v1947 = vunpack.c.l.b16 %v1691
        %v1948 = vunpack.c.l.b16 %v1692
        %v1949 = vunpack.c.l.b16 %v1693
        %v1950 = vunpack.c.l.b16 %v1694
        %v1951 = vunpack.c.l.b16 %v1695
        %v1952 = vunpack.c.l.b16 %v1696
        %v1953 = vunpack.c.l.b16 %v1697
        %v1954 = vunpack.c.l.b16 %v1698
        %v1955 = vunpack.c.l.b16 %v1699
        %v1956 = vunpack.c.l.b16 %v1700
        %v1957 = vunpack.c.l.b16 %v1701
        %v1958 = vunpack.c.l.b16 %v1702
        %v1959 = vunpack.c.l.b16 %v1703
        %v1960 = vunpack.c.l.b16 %v1704
        %v1961 = vunpack.c.l.b16 %v1705
        %v1962 = vunpack.c.l.b16 %v1706
        %v1963 = vunpack.c.l.b16 %v1707
        %v1964 = vunpack.c.l.b16 %v1708
        %v1965 = vunpack.c.l.b16 %v1709
        %v1966 = vunpack.c.l.b16 %v1710
        %v1967 = vunpack.c.l.b16 %v1711
        %v1968 = vunpack.c.l.b16 %v1712
        %v1969 = vunpack.c.l.b16 %v1713
        %v1970 = vunpack.c.l.b16 %v1714
        %v1971 = vunpack.c.l.b16 %v1715
        %v1972 = vunpack.c.l.b16 %v1716
        %v1973 = vunpack.c.l.b16 %v1717
        %v1974 = vunpack.c.l.b16 %v1718
        %v1975 = vunpack.c.l.b16 %v1719
        %v1976 = vunpack.c.l.b16 %v1720
        %v1977 = vunpack.c.l.b16 %v1721
        %v1978 = vunpack.c.l.b16 %v1722
        %v1979 = vunpack.c.l.b16 %v1723
        %v1980 = vunpack.c.l.b16 %v1724
        %v1981 = vunpack.c.l.b16 %v1725
        %v1982 = vunpack.c.l.b16 %v1726
        %v1983 = vunpack.c.l.b16 %v1727
        %v1984 = vunpack.c.l.b16 %v1728
        %v1985 = vunpack.c.l.b16 %v1729
        %v1986 = vunpack.c.l.b16 %v1730
        %v1987 = vunpack.c.l.b16 %v1731
        %v1988 = vunpack.c.l.b16 %v1732
        %v1989 = vunpack.c.l.b16 %v1733
        %v1990 = vunpack.c.l.b16 %v1734
        %v1991 = vunpack.c.l.b16 %v1735
        %v1992 = vunpack.c.l.b16 %v1736
        %v1993 = vunpack.c.l.b16 %v1737
        %v1994 = vunpack.c.l.b16 %v1738
        %v1995 = vunpack.c.l.b16 %v1739
        %v1996 = vunpack.c.l.b16 %v1740
        %v1997 = vunpack.c.l.b16 %v1741
        %v1998 = vunpack.c.l.b16 %v1742
        %v1999 = vunpack.c.l.b16 %v1743
        %v2000 = vunpack.c.l.b16 %v1744
        %v2001 = vunpack.c.l.b16 %v1745
        %v2002 = vunpack.c.l.b16 %v1746
        %v2003 = vunpack.c.l.b16 %v1747
        %v2004 = vunpack.c.l.b16 %v1748
        %v2005 = vunpack.c.l.b16 %v1749
        %v2006 = vunpack.c.l.b16 %v1750
        %v2007 = vunpack.c.l.b16 %v1751
        %v2008 = vunpack.c.l.b16 %v1752
        %v2009 = vunpack.c.l.b16 %v1753
        %v2010 = vunpack.c.l.b16 %v1754
        %v2011 = vunpack.c.l.b16 %v1755
        %v2012 = vunpack.c.l.b16 %v1756
        %v2013 = vunpack.c.l.b16 %v1757
        %v2014 = vunpack.c.l.b16 %v1758
        %v2015 = vunpack.c.l.b16 %v1759
        %v2016 = vunpack.c.l.b16 %v1760
        %v2017 = vunpack.c.l.b16 %v1761
        %v2018 = vunpack.c.l.b16 %v1762
        %v2019 = vunpack.c.l.b16 %v1763
        %v2020 = vunpack.c.l.b16 %v1764
        %v2021 = vunpack.c.l.b16 %v1765
        %v2022 = vunpack.c.l.b16 %v1766
        %v2023 = vunpack.c.l.b16 %v1767
        %v2024 = vunpack.c.l.b16 %v1768
        %v2025 = vunpack.c.l.b16 %v1769
        %v2026 = vunpack.c.l.b16 %v1770
        %v2027 = vunpack.c.l.b16 %v1771
        %v2028 = vunpack.c.l.b16 %v1772
        %v2029 = vunpack.c.l.b16 %v1773
        %v2030 = vunpack.c.l.b16 %v1774
        %v2031 = vunpack.c.l.b16 %v1775
        %v2032 = vunpack.c.l.b16 %v1776
        %v2033 = vunpack.c.l.b16 %v1777
        %v2034 = vunpack.c.l.b16 %v1778
        %v2035 = vunpack.c.l.b16 %v1779
        %v2036 = vunpack.c.l.b16 %v1780
        %v2037 = vunpack.c.l.b16 %v1781
        %v2038 = vunpack.c.l.b16 %v1782
        %v2039 = vunpack.c.l.b16 %v1783
        %v2040 = vunpack.c.l.b16 %v1784
        %v2041 = vunpack.c.l.b16 %v1785
        %v2042 = vunpack.c.l.b16 %v1786
        %v2043 = vunpack.c.l.b16 %v1787
        %v2044 = vunpack.c.l.b16 %v1788
        %v2045 = vunpack.c.l.b16 %v1789
        %v2046 = vunpack.c.l.b16 %v1790
        %v2047 = vunpack.c.l.b16 %v1791
        %v2048 = vunpack.c.l.b16 %v1792
        %v2049 = vunpack.c.l.b16 %v1793
        %v2050 = vunpack.c.l.b16 %v1794
        %v2051 = vunpack.c.l.b16 %v1795
        %v2052 = vunpack.c.l.b16 %v1796
        %v2053 = vunpack.c.l.b16 %v1797
        %v2054 = vunpack.c.l.b16 %v1798
        %v2055 = vunpack.c.l.b16 %v1799
        %v2056 = vunpack.c.l.b16 %v1800
        %v2057 = vunpack.c.l.b16 %v1801
        %v2058 = vunpack.c.l.b16 %v1802
        %v2059 = vunpack.c.l.b16 %v1803
        %v2060 = vunpack.c.l.b16 %v1804
        %v2061 = vunpack.c.l.b16 %v1805
        %v2062 = vunpack.c.l.b16 %v1806
        %v2063 = vunpack.c.l.b16 %v1807
        %v2064 = vpack.c.b16 %v1937, %v1936
        %v2065 = vpack.c.b16 %v1939, %v1938
        %v2066 = vpack.c.b16 %v1941, %v1940
        %v2067 = vpack.c.b16 %v1943, %v1942
        %v2068 = vpack.c.b16 %v1945, %v1944
        %v2069 = vpack.c.b16 %v1947, %v1946
        %v2070 = vpack.c.b16 %v1949, %v1948
        %v2071 = vpack.c.b16 %v1951, %v1950
        %v2072 = vpack.c.b16 %v1953, %v1952
        %v2073 = vpack.c.b16 %v1955, %v1954
        %v2074 = vpack.c.b16 %v1957, %v1956
        %v2075 = vpack.c.b16 %v1959, %v1958
        %v2076 = vpack.c.b16 %v1961, %v1960
        %v2077 = vpack.c.b16 %v1963, %v1962
        %v2078 = vpack.c.b16 %v1965, %v1964
        %v2079 = vpack.c.b16 %v1967, %v1966
        %v2080 = vpack.c.b16 %v1969, %v1968
        %v2081 = vpack.c.b16 %v1971, %v1970
        %v2082 = vpack.c.b16 %v1973, %v1972
        %v2083 = vpack.c.b16 %v1975, %v1974
        %v2084 = vpack.c.b16 %v1977, %v1976
        %v2085 = vpack.c.b16 %v1979, %v1978
        %v2086 = vpack.c.b16 %v1981, %v1980
        %v2087 = vpack.c.b16 %v1983, %v1982
        %v2088 = vpack.c.b16 %v1985, %v1984
        %v2089 = vpack.c.b16 %v1987, %v1986
        %v2090 = vpack.c.b16 %v1989, %v1988
        %v2091 = vpack.c.b16 %v1991, %v1990
        %v2092 = vpack.c.b16 %v1993, %v1992
        %v2093 = vpack.c.b16 %v1995, %v1994
        %v2094 = vpack.c.b16 %v1997, %v1996
        %v2095 = vpack.c.b16 %v1999, %v1998
        %v2096 = vpack.c.b16 %v2001, %v2000
        %v2097 = vpack.c.b16 %v2003, %v2002
        %v2098 = vpack.c.b16 %v2005, %v2004
        %v2099 = vpack.c.b16 %v2007, %v2006
        %v2100 = vpack.c.b16 %v2009, %v2008
        %v2101 = vpack.c.b16 %v2011, %v2010
        %v2102 = vpack.c.b16 %v2013, %v2012
        %v2103 = vpack.c.b16 %v2015, %v2014
        %v2104 = vpack.c.b16 %v2017, %v2016
        %v2105 = vpack.c.b16 %v2019, %v2018
        %v2106 = vpack.c.b16 %v2021, %v2020
        %v2107 = vpack.c.b16 %v2023, %v2022
        %v2108 = vpack.c.b16 %v2025, %v2024
        %v2109 = vpack.c.b16 %v2027, %v2026
        %v2110 = vpack.c.b16 %v2029, %v2028
        %v2111 = vpack.c.b16 %v2031, %v2030
        %v2112 = vpack.c.b16 %v2033, %v2032
        %v2113 = vpack.c.b16 %v2035, %v2034
        %v2114 = vpack.c.b16 %v2037, %v2036
        %v2115 = vpack.c.b16 %v2039, %v2038
        %v2116 = vpack.c.b16 %v2041, %v2040
        %v2117 = vpack.c.b16 %v2043, %v2042
        %v2118 = vpack.c.b16 %v2045, %v2044
        %v2119 = vpack.c.b16 %v2047, %v2046
        %v2120 = vpack.c.b16 %v2049, %v2048
        %v2121 = vpack.c.b16 %v2051, %v2050
        %v2122 = vpack.c.b16 %v2053, %v2052
        %v2123 = vpack.c.b16 %v2055, %v2054
        %v2124 = vpack.c.b16 %v2057, %v2056
        %v2125 = vpack.c.b16 %v2059, %v2058
        %v2126 = vpack.c.b16 %v2061, %v2060
        %v2127 = vpack.c.b16 %v2063, %v2062
        %2192 = vmatpush.bf16.msra.mxu0 %v2071
        %2193 = vmatpush.bf16.msra.mxu0 %v2070
        %2194 = vmatpush.bf16.msra.mxu0 %v2069
        %2195 = vmatpush.bf16.msra.mxu0 %v2068
        %2196 = vmatpush.bf16.msra.mxu0 %v2067
        %2197 = vmatpush.bf16.msra.mxu0 %v2066
        %2198 = vmatpush.bf16.msra.mxu0 %v2065
        %2199 = vmatpush.bf16.msra.mxu0 %v2064
        %2200 = vmatmul.bf16.gmra.mxu0 %v1672
        %v2201 = vpop.f32.mrf.mxu0
        %v2202 = vadd.f32 0.0, %v2201
        %v2203 = vpop.f32.mrf.mxu0
        %2204 = vdwg.mxu0
        %2205 = vmatpush.bf16.msra.mxu0 %v2079
        %2206 = vmatpush.bf16.msra.mxu0 %v2078
        %2207 = vmatpush.bf16.msra.mxu0 %v2077
        %2208 = vmatpush.bf16.msra.mxu0 %v2076
        %2209 = vmatpush.bf16.msra.mxu0 %v2075
        %2210 = vmatpush.bf16.msra.mxu0 %v2074
        %2211 = vmatpush.bf16.msra.mxu0 %v2073
        %2212 = vmatpush.bf16.msra.mxu0 %v2072
        %2213 = vmatmul.bf16.gmra.mxu0 %v1673
        %v2214 = vpop.f32.mrf.mxu0
        %v2215 = vadd.f32 %v2202, %v2214
        %v2216 = vpop.f32.mrf.mxu0
        %2217 = vdwg.mxu0
        %2218 = vmatpush.bf16.msra.mxu0 %v2087
        %2219 = vmatpush.bf16.msra.mxu0 %v2086
        %2220 = vmatpush.bf16.msra.mxu0 %v2085
        %2221 = vmatpush.bf16.msra.mxu0 %v2084
        %2222 = vmatpush.bf16.msra.mxu0 %v2083
        %2223 = vmatpush.bf16.msra.mxu0 %v2082
        %2224 = vmatpush.bf16.msra.mxu0 %v2081
        %2225 = vmatpush.bf16.msra.mxu0 %v2080
        %2226 = vmatmul.bf16.gmra.mxu0 %v1674
        %v2227 = vpop.f32.mrf.mxu0
        %v2228 = vadd.f32 %v2215, %v2227
        %v2229 = vpop.f32.mrf.mxu0
        %2230 = vdwg.mxu0
        %2231 = vmatpush.bf16.msra.mxu0 %v2095
        %2232 = vmatpush.bf16.msra.mxu0 %v2094
        %2233 = vmatpush.bf16.msra.mxu0 %v2093
        %2234 = vmatpush.bf16.msra.mxu0 %v2092
        %2235 = vmatpush.bf16.msra.mxu0 %v2091
        %2236 = vmatpush.bf16.msra.mxu0 %v2090
        %2237 = vmatpush.bf16.msra.mxu0 %v2089
        %2238 = vmatpush.bf16.msra.mxu0 %v2088
        %2239 = vmatmul.bf16.gmra.mxu0 %v1675
        %v2240 = vpop.f32.mrf.mxu0
        %v2241 = vadd.f32 %v2228, %v2240
        %v2242 = vpop.f32.mrf.mxu0
        %2243 = vdwg.mxu0
        %2244 = vmatpush.bf16.msra.mxu0 %v2103
        %2245 = vmatpush.bf16.msra.mxu0 %v2102
        %2246 = vmatpush.bf16.msra.mxu0 %v2101
        %2247 = vmatpush.bf16.msra.mxu0 %v2100
        %2248 = vmatpush.bf16.msra.mxu0 %v2099
        %2249 = vmatpush.bf16.msra.mxu0 %v2098
        %2250 = vmatpush.bf16.msra.mxu0 %v2097
        %2251 = vmatpush.bf16.msra.mxu0 %v2096
        %2252 = vmatmul.bf16.gmra.mxu0 %v1676
        %v2253 = vpop.f32.mrf.mxu0
        %v2254 = vadd.f32 %v2241, %v2253
        %v2255 = vpop.f32.mrf.mxu0
        %2256 = vdwg.mxu0
        %2257 = vmatpush.bf16.msra.mxu0 %v2111
        %2258 = vmatpush.bf16.msra.mxu0 %v2110
        %2259 = vmatpush.bf16.msra.mxu0 %v2109
        %2260 = vmatpush.bf16.msra.mxu0 %v2108
        %2261 = vmatpush.bf16.msra.mxu0 %v2107
        %2262 = vmatpush.bf16.msra.mxu0 %v2106
        %2263 = vmatpush.bf16.msra.mxu0 %v2105
        %2264 = vmatpush.bf16.msra.mxu0 %v2104
        %2265 = vmatmul.bf16.gmra.mxu0 %v1677
        %v2266 = vpop.f32.mrf.mxu0
        %v2267 = vadd.f32 %v2254, %v2266
        %v2268 = vpop.f32.mrf.mxu0
        %2269 = vdwg.mxu0
        %2270 = vmatpush.bf16.msra.mxu0 %v2119
        %2271 = vmatpush.bf16.msra.mxu0 %v2118
        %2272 = vmatpush.bf16.msra.mxu0 %v2117
        %2273 = vmatpush.bf16.msra.mxu0 %v2116
        %2274 = vmatpush.bf16.msra.mxu0 %v2115
        %2275 = vmatpush.bf16.msra.mxu0 %v2114
        %2276 = vmatpush.bf16.msra.mxu0 %v2113
        %2277 = vmatpush.bf16.msra.mxu0 %v2112
        %2278 = vmatmul.bf16.gmra.mxu0 %v1678
        %v2279 = vpop.f32.mrf.mxu0
        %v2280 = vadd.f32 %v2267, %v2279
        %v2281 = vpop.f32.mrf.mxu0
        %2282 = vdwg.mxu0
        %2283 = vmatpush.bf16.msra.mxu0 %v2127
        %2284 = vmatpush.bf16.msra.mxu0 %v2126
        %2285 = vmatpush.bf16.msra.mxu0 %v2125
        %2286 = vmatpush.bf16.msra.mxu0 %v2124
        %2287 = vmatpush.bf16.msra.mxu0 %v2123
        %2288 = vmatpush.bf16.msra.mxu0 %v2122
        %2289 = vmatpush.bf16.msra.mxu0 %v2121
        %2290 = vmatpush.bf16.msra.mxu0 %v2120
        %2291 = vmatmul.bf16.gmra.mxu0 %v1679
        %v2292 = vpop.f32.mrf.mxu0
        %v2293 = vadd.f32 %v2280, %v2292
        %v2294 = vpop.f32.mrf.mxu0
        %2295 = vdwg.mxu0
        %v2392 = vunpack.c.l.b16 %v1576
        %v2393 = vunpack.c.l.b16 %v1577
        %v2394 = vunpack.c.l.b16 %v1578
        %v2395 = vunpack.c.l.b16 %v1579
        %v2396 = vunpack.c.l.b16 %v1580
        %v2397 = vunpack.c.l.b16 %v1581
        %v2398 = vunpack.c.l.b16 %v1582
        %v2399 = vunpack.c.l.b16 %v1583
        %v2400 = vunpack.c.l.b16 %v1584
        %v2401 = vunpack.c.l.b16 %v1585
        %v2402 = vunpack.c.l.b16 %v1586
        %v2403 = vunpack.c.l.b16 %v1587
        %v2404 = vunpack.c.l.b16 %v1588
        %v2405 = vunpack.c.l.b16 %v1589
        %v2406 = vunpack.c.l.b16 %v1590
        %v2407 = vunpack.c.l.b16 %v1591
        %v2408 = vunpack.c.l.b16 %v1592
        %v2409 = vunpack.c.l.b16 %v1593
        %v2410 = vunpack.c.l.b16 %v1594
        %v2411 = vunpack.c.l.b16 %v1595
        %v2412 = vunpack.c.l.b16 %v1596
        %v2413 = vunpack.c.l.b16 %v1597
        %v2414 = vunpack.c.l.b16 %v1598
        %v2415 = vunpack.c.l.b16 %v1599
        %v2416 = vunpack.c.l.b16 %v1600
        %v2417 = vunpack.c.l.b16 %v1601
        %v2418 = vunpack.c.l.b16 %v1602
        %v2419 = vunpack.c.l.b16 %v1603
        %v2420 = vunpack.c.l.b16 %v1604
        %v2421 = vunpack.c.l.b16 %v1605
        %v2422 = vunpack.c.l.b16 %v1606
        %v2423 = vunpack.c.l.b16 %v1607
        %v2424 = vunpack.c.l.b16 %v1608
        %v2425 = vunpack.c.l.b16 %v1609
        %v2426 = vunpack.c.l.b16 %v1610
        %v2427 = vunpack.c.l.b16 %v1611
        %v2428 = vunpack.c.l.b16 %v1612
        %v2429 = vunpack.c.l.b16 %v1613
        %v2430 = vunpack.c.l.b16 %v1614
        %v2431 = vunpack.c.l.b16 %v1615
        %v2432 = vunpack.c.l.b16 %v1616
        %v2433 = vunpack.c.l.b16 %v1617
        %v2434 = vunpack.c.l.b16 %v1618
        %v2435 = vunpack.c.l.b16 %v1619
        %v2436 = vunpack.c.l.b16 %v1620
        %v2437 = vunpack.c.l.b16 %v1621
        %v2438 = vunpack.c.l.b16 %v1622
        %v2439 = vunpack.c.l.b16 %v1623
        %v2440 = vunpack.c.l.b16 %v1624
        %v2441 = vunpack.c.l.b16 %v1625
        %v2442 = vunpack.c.l.b16 %v1626
        %v2443 = vunpack.c.l.b16 %v1627
        %v2444 = vunpack.c.l.b16 %v1628
        %v2445 = vunpack.c.l.b16 %v1629
        %v2446 = vunpack.c.l.b16 %v1630
        %v2447 = vunpack.c.l.b16 %v1631
        %v2448 = vunpack.c.l.b16 %v1632
        %v2449 = vunpack.c.l.b16 %v1633
        %v2450 = vunpack.c.l.b16 %v1634
        %v2451 = vunpack.c.l.b16 %v1635
        %v2452 = vunpack.c.l.b16 %v1636
        %v2453 = vunpack.c.l.b16 %v1637
        %v2454 = vunpack.c.l.b16 %v1638
        %v2455 = vunpack.c.l.b16 %v1639
        %v2456 = vunpack.c.l.b16 %v1640
        %v2457 = vunpack.c.l.b16 %v1641
        %v2458 = vunpack.c.l.b16 %v1642
        %v2459 = vunpack.c.l.b16 %v1643
        %v2460 = vunpack.c.l.b16 %v1644
        %v2461 = vunpack.c.l.b16 %v1645
        %v2462 = vunpack.c.l.b16 %v1646
        %v2463 = vunpack.c.l.b16 %v1647
        %v2464 = vunpack.c.l.b16 %v1648
        %v2465 = vunpack.c.l.b16 %v1649
        %v2466 = vunpack.c.l.b16 %v1650
        %v2467 = vunpack.c.l.b16 %v1651
        %v2468 = vunpack.c.l.b16 %v1652
        %v2469 = vunpack.c.l.b16 %v1653
        %v2470 = vunpack.c.l.b16 %v1654
        %v2471 = vunpack.c.l.b16 %v1655
        %v2472 = vunpack.c.l.b16 %v1656
        %v2473 = vunpack.c.l.b16 %v1657
        %v2474 = vunpack.c.l.b16 %v1658
        %v2475 = vunpack.c.l.b16 %v1659
        %v2476 = vunpack.c.l.b16 %v1660
        %v2477 = vunpack.c.l.b16 %v1661
        %v2478 = vunpack.c.l.b16 %v1662
        %v2479 = vunpack.c.l.b16 %v1663
        %v2480 = vunpack.c.l.b16 %v1664
        %v2481 = vunpack.c.l.b16 %v1665
        %v2482 = vunpack.c.l.b16 %v1666
        %v2483 = vunpack.c.l.b16 %v1667
        %v2484 = vunpack.c.l.b16 %v1668
        %v2485 = vunpack.c.l.b16 %v1669
        %v2486 = vunpack.c.l.b16 %v1670
        %v2487 = vunpack.c.l.b16 %v1671
        %v2488 = vpack.c.b16 %v2393, %v2392
        %v2489 = vpack.c.b16 %v2395, %v2394
        %v2490 = vpack.c.b16 %v2397, %v2396
        %v2491 = vpack.c.b16 %v2399, %v2398
        %v2492 = vpack.c.b16 %v2401, %v2400
        %v2493 = vpack.c.b16 %v2403, %v2402
        %v2494 = vpack.c.b16 %v2405, %v2404
        %v2495 = vpack.c.b16 %v2407, %v2406
        %v2496 = vpack.c.b16 %v2409, %v2408
        %v2497 = vpack.c.b16 %v2411, %v2410
        %v2498 = vpack.c.b16 %v2413, %v2412
        %v2499 = vpack.c.b16 %v2415, %v2414
        %v2500 = vpack.c.b16 %v2417, %v2416
        %v2501 = vpack.c.b16 %v2419, %v2418
        %v2502 = vpack.c.b16 %v2421, %v2420
        %v2503 = vpack.c.b16 %v2423, %v2422
        %v2504 = vpack.c.b16 %v2425, %v2424
        %v2505 = vpack.c.b16 %v2427, %v2426
        %v2506 = vpack.c.b16 %v2429, %v2428
        %v2507 = vpack.c.b16 %v2431, %v2430
        %v2508 = vpack.c.b16 %v2433, %v2432
        %v2509 = vpack.c.b16 %v2435, %v2434
        %v2510 = vpack.c.b16 %v2437, %v2436
        %v2511 = vpack.c.b16 %v2439, %v2438
        %v2512 = vpack.c.b16 %v2441, %v2440
        %v2513 = vpack.c.b16 %v2443, %v2442
        %v2514 = vpack.c.b16 %v2445, %v2444
        %v2515 = vpack.c.b16 %v2447, %v2446
        %v2516 = vpack.c.b16 %v2449, %v2448
        %v2517 = vpack.c.b16 %v2451, %v2450
        %v2518 = vpack.c.b16 %v2453, %v2452
        %v2519 = vpack.c.b16 %v2455, %v2454
        %v2520 = vpack.c.b16 %v2457, %v2456
        %v2521 = vpack.c.b16 %v2459, %v2458
        %v2522 = vpack.c.b16 %v2461, %v2460
        %v2523 = vpack.c.b16 %v2463, %v2462
        %v2524 = vpack.c.b16 %v2465, %v2464
        %v2525 = vpack.c.b16 %v2467, %v2466
        %v2526 = vpack.c.b16 %v2469, %v2468
        %v2527 = vpack.c.b16 %v2471, %v2470
        %v2528 = vpack.c.b16 %v2473, %v2472
        %v2529 = vpack.c.b16 %v2475, %v2474
        %v2530 = vpack.c.b16 %v2477, %v2476
        %v2531 = vpack.c.b16 %v2479, %v2478
        %v2532 = vpack.c.b16 %v2481, %v2480
        %v2533 = vpack.c.b16 %v2483, %v2482
        %v2534 = vpack.c.b16 %v2485, %v2484
        %v2535 = vpack.c.b16 %v2487, %v2486
        %2584 = vmatpush.bf16.msra.mxu0 %v2495
        %2585 = vmatpush.bf16.msra.mxu0 %v2494
        %2586 = vmatpush.bf16.msra.mxu0 %v2493
        %2587 = vmatpush.bf16.msra.mxu0 %v2492
        %2588 = vmatpush.bf16.msra.mxu0 %v2491
        %2589 = vmatpush.bf16.msra.mxu0 %v2490
        %2590 = vmatpush.bf16.msra.mxu0 %v2489
        %2591 = vmatpush.bf16.msra.mxu0 %v2488
        %2592 = vmatmul.bf16.gmra.mxu0 %v1570
        %v2593 = vpop.f32.mrf.mxu0
        %v2594 = vadd.f32 %v2293, %v2593
        %v2595 = vpop.f32.mrf.mxu0
        %2596 = vdwg.mxu0
        %2597 = vmatpush.bf16.msra.mxu0 %v2503
        %2598 = vmatpush.bf16.msra.mxu0 %v2502
        %2599 = vmatpush.bf16.msra.mxu0 %v2501
        %2600 = vmatpush.bf16.msra.mxu0 %v2500
        %2601 = vmatpush.bf16.msra.mxu0 %v2499
        %2602 = vmatpush.bf16.msra.mxu0 %v2498
        %2603 = vmatpush.bf16.msra.mxu0 %v2497
        %2604 = vmatpush.bf16.msra.mxu0 %v2496
        %2605 = vmatmul.bf16.gmra.mxu0 %v1571
        %v2606 = vpop.f32.mrf.mxu0
        %v2607 = vadd.f32 %v2594, %v2606
        %v2608 = vpop.f32.mrf.mxu0
        %2609 = vdwg.mxu0
        %2610 = vmatpush.bf16.msra.mxu0 %v2511
        %2611 = vmatpush.bf16.msra.mxu0 %v2510
        %2612 = vmatpush.bf16.msra.mxu0 %v2509
        %2613 = vmatpush.bf16.msra.mxu0 %v2508
        %2614 = vmatpush.bf16.msra.mxu0 %v2507
        %2615 = vmatpush.bf16.msra.mxu0 %v2506
        %2616 = vmatpush.bf16.msra.mxu0 %v2505
        %2617 = vmatpush.bf16.msra.mxu0 %v2504
        %2618 = vmatmul.bf16.gmra.mxu0 %v1572
        %v2619 = vpop.f32.mrf.mxu0
        %v2620 = vadd.f32 %v2607, %v2619
        %v2621 = vpop.f32.mrf.mxu0
        %2622 = vdwg.mxu0
        %2623 = vmatpush.bf16.msra.mxu0 %v2519
        %2624 = vmatpush.bf16.msra.mxu0 %v2518
        %2625 = vmatpush.bf16.msra.mxu0 %v2517
        %2626 = vmatpush.bf16.msra.mxu0 %v2516
        %2627 = vmatpush.bf16.msra.mxu0 %v2515
        %2628 = vmatpush.bf16.msra.mxu0 %v2514
        %2629 = vmatpush.bf16.msra.mxu0 %v2513
        %2630 = vmatpush.bf16.msra.mxu0 %v2512
        %2631 = vmatmul.bf16.gmra.mxu0 %v1573
        %v2632 = vpop.f32.mrf.mxu0
        %v2633 = vadd.f32 %v2620, %v2632
        %v2634 = vpop.f32.mrf.mxu0
        %2635 = vdwg.mxu0
        %2636 = vmatpush.bf16.msra.mxu0 %v2527
        %2637 = vmatpush.bf16.msra.mxu0 %v2526
        %2638 = vmatpush.bf16.msra.mxu0 %v2525
        %2639 = vmatpush.bf16.msra.mxu0 %v2524
        %2640 = vmatpush.bf16.msra.mxu0 %v2523
        %2641 = vmatpush.bf16.msra.mxu0 %v2522
        %2642 = vmatpush.bf16.msra.mxu0 %v2521
        %2643 = vmatpush.bf16.msra.mxu0 %v2520
        %2644 = vmatmul.bf16.gmra.mxu0 %v1574
        %v2645 = vpop.f32.mrf.mxu0
        %v2646 = vadd.f32 %v2633, %v2645
        %v2647 = vpop.f32.mrf.mxu0
        %2648 = vdwg.mxu0
        %2649 = vmatpush.bf16.msra.mxu0 %v2535
        %2650 = vmatpush.bf16.msra.mxu0 %v2534
        %2651 = vmatpush.bf16.msra.mxu0 %v2533
        %2652 = vmatpush.bf16.msra.mxu0 %v2532
        %2653 = vmatpush.bf16.msra.mxu0 %v2531
        %2654 = vmatpush.bf16.msra.mxu0 %v2530
        %2655 = vmatpush.bf16.msra.mxu0 %v2529
        %2656 = vmatpush.bf16.msra.mxu0 %v2528
        %2657 = vmatmul.bf16.gmra.mxu0 %v1575
        %v2658 = vpop.f32.mrf.mxu0
        %v2659 = vadd.f32 %v2646, %v2658
        %v2660 = vpop.f32.mrf.mxu0
        %2661 = vdwg.mxu0
        %v2662 = vld [vmem:[%s9] sm:$0x1]
        %v2663 = vadd.f32 %v2659, %v2662
        %2664 = vst [vmem:[%s427] sm:$0x1] %v2663
        %s2665 = sand.u32 %s259, 1
        %s2666 = scalar_lea.sflag [#allocation4], %s2665
        %s2667 = sand.u32 %s259, 1
        %s2668 = scalar_lea.vmem [#allocation8], %s2667
        // Predicated region
        $region73: #{tpu_custom_call.1} parent=59 // pred_check
          %p2669 = pneg %p269
        $region74: #{tpu_custom_call.1} parent=59 // pred_check_branch
          %2671 = sbr.rel (%p2669) target = $region76
        $region75: #{tpu_custom_call.1} parent=59 // pred_region
          %2673 = vsyncadd %s2666, 0
          %s2674 = scalar_lea.hbm %s10, %s26
          %s2676 = sshll.u32 %s2668, 4
          %s2677 = int_to_ptr.vmem [resolvable:$true] %s2676
          %s2678 = sshll.u32 %s2674, 4
          %s2679 = int_to_ptr.hbm [resolvable:$true] %s2678
          %2681 = dma.vmem_to_hbm [thread:$0]  %s2677, 16, %s2679, %s2666
        $region76: #{tpu_custom_call.1} parent=59 // pred_fallthru
          _
      $region60: #{tpu_custom_call.1} parent=5 // pred_fallthru
        _
      %p2682 = scmp.le.s32.totalorder 2, %s21
      // Predicated region
      $region77: #{tpu_custom_call.1} parent=5 // pred_check
        %p2683 = pneg %p2682
      $region78: #{tpu_custom_call.1} parent=5 // pred_check_branch
        %2685 = sbr.rel (%p2683) target = $region80
      $region79: #{tpu_custom_call.1} parent=5 // pred_region
        %s2686 = ssub.s32 %s21, 2
        // Predicated region
        $region81: #{tpu_custom_call.1} parent=79 // pred_check
          %p2687 = pneg %p275
        $region82: #{tpu_custom_call.1} parent=79 // pred_check_branch
          %2689 = sbr.rel (%p2687) target = $region84
        $region83: #{tpu_custom_call.1} parent=79 // pred_region
          %s2690 = sand.u32 %s260, 1
          %s2691 = scalar_lea.sflag [#allocation4], %s2690
          %s2692 = sand.u32 %s260, 1
          %s2693 = scalar_lea.vmem [#allocation8], %s2692
          %2695 = dma.done %s2691, 16
        $region84: #{tpu_custom_call.1} parent=79 // pred_fallthru
          _
      $region80: #{tpu_custom_call.1} parent=5 // pred_fallthru
        _
    $region6: #{tpu_custom_call.1} parent=1 // loop_footer
      %s25 = sadd.s32 1, %s21
    $region7: #{tpu_custom_call.1} parent=1 // loop_footer_branch
      %20 = sbr.rel target = $region3
    $region8: #{tpu_custom_call.1} parent=1 // loop_exit
      _
    %2696 = vsyncpa [#allocation3], 1
    %s2697 = scalar_lea.sflag [#allocation3], 1
    %2698 = vsyncpa %s2697, 1
    %2699 = vsyncpa [#allocation6], 1
    %2700 = vsyncpa [#allocation4], 1
    %s2701 = scalar_lea.sflag [#allocation4], 1
    %2702 = vsyncpa %s2701, 1

</llo_original>
